<compile_context>
chip_gen: v7x
topology: tpu7x:2x2x1
jax: 0.10.0
libtpu: 0.0.40
codegen_flags: <defaults>
</compile_context>

<pallas_src>
import jax
import jax.numpy as jnp
from jax.experimental import pallas as pl
from jax.experimental.pallas import tpu as pltpu

LANE = 128           # output lane padding target
IN_DIM = 1024
HID1 = 512
HID2 = 256
MAX_TILE_M = 1024    # rows per grid step (upper bound)


def _round_up(x, m):
    return (x + m - 1) // m * m


def _inscls_kernel(x_ref, w1_ref, b1_ref, w23_ref, b23_ref, o_ref):
    # x arrives f32 (4 B/elem of HBM traffic, no wrapper-side cast); cast to bf16
    # on the VPU, which has slack next to the MXU work.
    x = x_ref[...].astype(jnp.bfloat16)

    # fc1 + relu: bf16 MXU matmul with f32 accumulation; bias add / relu in f32.
    h1 = jnp.dot(x, w1_ref[...], preferred_element_type=jnp.float32)
    h1 = jnp.maximum(h1 + b1_ref[...], 0.0)

    # fc2 + classifier fused into a single matmul (no activation between them in
    # the reference forward): W23 = w2 @ w3 (lane-padded), b23 = b2 @ w3 + b3.
    logits = jnp.dot(h1.astype(jnp.bfloat16), w23_ref[...],
                     preferred_element_type=jnp.float32) + b23_ref[...]

    # Sigmoid in f32 (EUP), lane-dense bf16 store.
    o_ref[...] = jax.nn.sigmoid(logits).astype(o_ref.dtype)


def prepare_kernel_params(params):
    """Fuse fc2/fc3, cast weights to bf16, pad the fused classifier to a
    lane-dense (…,128) width. Biases stay f32 (tiny; added in f32 in-kernel)."""
    num_cls = params["w3"].shape[1]
    n_pad = _round_up(num_cls, LANE)

    w2f = params["w2"].astype(jnp.float32)
    w3f = params["w3"].astype(jnp.float32)
    w23 = w2f @ w3f                                        # (512, num_cls), f32
    b23 = params["b2"].astype(jnp.float32) @ w3f + params["b3"].astype(jnp.float32)

    w23 = jnp.pad(w23, ((0, 0), (0, n_pad - num_cls)))
    b23 = jnp.pad(b23, ((0, 0), (0, n_pad - num_cls)))

    return {
        "w1": params["w1"].astype(jnp.bfloat16),
        "b1": params["b1"].astype(jnp.float32),
        "w23": w23.astype(jnp.bfloat16),
        "b23": b23.astype(jnp.float32),
        "num_cls": num_cls,
    }


def _choose_tile_m(batch):
    """Rows per grid step: >=2 tiles whenever the batch permits (so v7x megacore
    can shard the batch axis across its 2 TCs), <= MAX_TILE_M rows per tile,
    multiple of 16 (bf16 sublane packing), and batch padding kept minimal."""
    n_tiles = max(2, -(-batch // MAX_TILE_M))              # cdiv
    tile_m = max(16, _round_up(-(-batch // n_tiles), 16))  # cdiv -> multiple of 16
    return min(MAX_TILE_M, tile_m)


def inscls_forward(x, kparams):
    """x: (batch, 1024) float32. kparams: output of prepare_kernel_params.
    Returns (batch, num_cls) bf16 sigmoid probabilities."""
    w1, b1 = kparams["w1"], kparams["b1"]
    w23, b23 = kparams["w23"], kparams["b23"]
    num_cls = kparams["num_cls"]
    n_pad = w23.shape[1]

    batch = x.shape[0]
    tile_m = _choose_tile_m(batch)
    batch_p = _round_up(batch, tile_m)
    if batch_p != batch:
        # Minimal f32 pad of the tail tile only; no whole-array dtype cast here.
        x = jnp.pad(x, ((0, batch_p - batch), (0, 0)))
    grid_m = batch_p // tile_m

    flops = 2 * batch_p * (IN_DIM * HID1 + HID1 * n_pad)
    bytes_accessed = (
        batch_p * IN_DIM * 4             # activations in (f32, read once)
        + (w1.size + w23.size) * 2       # weights (bf16)
        + (b1.size + b23.size) * 4       # biases (f32)
        + batch_p * n_pad * 2            # output (bf16)
    )

    out_p = pl.pallas_call(
        _inscls_kernel,
        out_shape=jax.ShapeDtypeStruct((batch_p, n_pad), jnp.bfloat16),
        grid=(grid_m,),
        in_specs=[
            pl.BlockSpec((tile_m, IN_DIM), lambda i: (i, 0)),  # x: tiled over batch
            # Constant block index -> fetched once, stays VMEM-resident across steps.
            pl.BlockSpec(w1.shape, lambda i: (0, 0)),
            pl.BlockSpec(b1.shape, lambda i: (0, 0)),
            pl.BlockSpec(w23.shape, lambda i: (0, 0)),
            pl.BlockSpec(b23.shape, lambda i: (0, 0)),
        ],
        out_specs=pl.BlockSpec((tile_m, n_pad), lambda i: (i, 0)),
        compiler_params=pltpu.CompilerParams(
            dimension_semantics=("parallel",),   # v7x: shard batch tiles over 2 TCs
            vmem_limit_bytes=32 << 20,           # headroom for 512-1024-row tiles
        ),
        cost_estimate=pl.CostEstimate(
            flops=flops,
            transcendentals=batch_p * n_pad,     # sigmoid -> exp
            bytes_accessed=bytes_accessed,
        ),
    )(x, w1, b1, w23, b23)

    return out_p[:batch, :num_cls]


def init_params(key, num_cls):
    """Deterministic synthetic parameters (PyTorch Linear-like uniform init),
    stored pre-transposed as (in_features, out_features), f32."""
    ks = jax.random.split(key, 6)

    def linear(kw, kb, fan_in, fan_out):
        bound = 1.0 / jnp.sqrt(fan_in)
        w = jax.random.uniform(kw, (fan_in, fan_out), jnp.float32, -bound, bound)
        b = jax.random.uniform(kb, (1, fan_out), jnp.float32, -bound, bound)
        return w, b

    w1, b1 = linear(ks[0], ks[1], IN_DIM, HID1)
    w2, b2 = linear(ks[2], ks[3], HID1, HID2)
    w3, b3 = linear(ks[4], ks[5], HID2, num_cls)
    return {"w1": w1, "b1": b1, "w2": w2, "b2": b2, "w3": w3, "b3": b3}


def reference_forward_f32(x, params):
    h1 = jnp.maximum(x @ params["w1"] + params["b1"], 0.0)
    h2 = h1 @ params["w2"] + params["b2"]
    return jax.nn.sigmoid(h2 @ params["w3"] + params["b3"])


def reference_forward_kernel_precision(x, params):
    """Mirrors the kernel numerics: bf16 MXU inputs with f32 accumulation,
    fc2/fc3 fused into one (f32-precomputed, bf16-cast) matmul, bf16 output."""
    bf = lambda a: a.astype(jnp.bfloat16)
    w23 = params["w2"] @ params["w3"]
    b23 = params["b2"] @ params["w3"] + params["b3"]
    h1 = jnp.dot(bf(x), bf(params["w1"]),
                 preferred_element_type=jnp.float32) + params["b1"]
    h1 = jnp.maximum(h1, 0.0)
    logits = jnp.dot(bf(h1), bf(w23), preferred_element_type=jnp.float32) + b23
    return jax.nn.sigmoid(logits).astype(jnp.bfloat16)


if __name__ == "__main__":
    key = jax.random.PRNGKey(0)
    k_x, k_p = jax.random.split(key)

    num_cls = 4  # small synthetic class count
    params = init_params(k_p, num_cls)
    kparams = prepare_kernel_params(params)

    # batch=8  -> single tile;  batch=40 -> two tiles + padded tail (exercises grid/pad path).
    for batch in (8, 40):
        xb = jax.random.normal(jax.random.fold_in(k_x, batch),
                               (batch, IN_DIM), dtype=jnp.float32)

        out = jax.block_until_ready(inscls_forward(xb, kparams))
        assert out.shape == (batch, num_cls)
        assert out.dtype == jnp.bfloat16

        # Same-precision reference (bf16 matmuls, fused fc2/fc3): tight tolerance.
        ref_k = reference_forward_kernel_precision(xb, params)
        assert jnp.allclose(out.astype(jnp.float32), ref_k.astype(jnp.float32),
                            atol=1e-2, rtol=1e-2), "mismatch vs same-precision reference"

        # Full-f32 reference: loose tolerance covers bf16 matmul / output rounding.
        ref_f = reference_forward_f32(xb, params)
        assert jnp.allclose(out.astype(jnp.float32), ref_f,
                            atol=5e-2, rtol=5e-2), "mismatch vs f32 reference"

    print("KERNEL_OK")
</pallas_src>

<mosaic_0001>
module attributes {stable_mosaic.version = 11 : i64} {
  func.func @_inscls_kernel(%arg0: i32, %arg1: memref<16x1024xf32, #tpu.memory_space<vmem>>, %arg2: memref<1024x512xbf16, #tpu.memory_space<vmem>>, %arg3: memref<1x512xf32, #tpu.memory_space<vmem>>, %arg4: memref<512x128xbf16, #tpu.memory_space<vmem>>, %arg5: memref<1x128xf32, #tpu.memory_space<vmem>>, %arg6: memref<16x128xbf16, #tpu.memory_space<vmem>>) attributes {dimension_semantics = [#tpu.dimension_semantics<parallel>], iteration_bounds = array<i64: 1>, scalar_prefetch = 0 : i64, scratch_operands = 0 : i64, tpu.core_type = #tpu.core_type<tc>, window_params = [{transform_indices = @transform_0, window_bounds = array<i64: 16, 1024>}, {pipeline_mode = #tpu.pipeline_mode<synchronous>, transform_indices = @transform_1, window_bounds = array<i64: 1024, 512>}, {pipeline_mode = #tpu.pipeline_mode<synchronous>, transform_indices = @transform_2, window_bounds = array<i64: 1, 512>}, {pipeline_mode = #tpu.pipeline_mode<synchronous>, transform_indices = @transform_3, window_bounds = array<i64: 512, 128>}, {pipeline_mode = #tpu.pipeline_mode<synchronous>, transform_indices = @transform_4, window_bounds = array<i64: 1, 128>}, {transform_indices = @transform_5, window_bounds = array<i64: 16, 128>}]} {
    %c0 = arith.constant 0 : index
    %c0_0 = arith.constant 0 : index
    %0 = vector.load %arg1[%c0, %c0_0] : memref<16x1024xf32, #tpu.memory_space<vmem>>, vector<16x1024xf32>
    %1 = arith.truncf %0 : vector<16x1024xf32> to vector<16x1024xbf16>
    %c0_1 = arith.constant 0 : index
    %c0_2 = arith.constant 0 : index
    %2 = vector.load %arg2[%c0_1, %c0_2] : memref<1024x512xbf16, #tpu.memory_space<vmem>>, vector<1024x512xbf16>
    %cst = arith.constant dense<0.000000e+00> : vector<16x512xf32>
    %3 = tpu.matmul %1, %2, %cst {dimension_numbers = #tpu.dot_dimension_numbers<[1], [0], [0], [1], [0, 0, 1, 1], [], []>} : vector<16x1024xbf16>, vector<1024x512xbf16>, vector<16x512xf32> -> vector<16x512xf32>
    %c0_3 = arith.constant 0 : index
    %c0_4 = arith.constant 0 : index
    %4 = vector.load %arg3[%c0_3, %c0_4] : memref<1x512xf32, #tpu.memory_space<vmem>>, vector<1x512xf32>
    %5 = vector.broadcast %4 : vector<1x512xf32> to vector<16x512xf32>
    %6 = arith.addf %3, %5 : vector<16x512xf32>
    %cst_5 = arith.constant 0.000000e+00 : f32
    %7 = vector.broadcast %cst_5 : f32 to vector<16x512xf32>
    %8 = arith.maximumf %6, %7 : vector<16x512xf32>
    %9 = arith.truncf %8 : vector<16x512xf32> to vector<16x512xbf16>
    %c0_6 = arith.constant 0 : index
    %c0_7 = arith.constant 0 : index
    %10 = vector.load %arg4[%c0_6, %c0_7] : memref<512x128xbf16, #tpu.memory_space<vmem>>, vector<512x128xbf16>
    %cst_8 = arith.constant dense<0.000000e+00> : vector<16x128xf32>
    %11 = tpu.matmul %9, %10, %cst_8 {dimension_numbers = #tpu.dot_dimension_numbers<[1], [0], [0], [1], [0, 0, 1, 1], [], []>} : vector<16x512xbf16>, vector<512x128xbf16>, vector<16x128xf32> -> vector<16x128xf32>
    %c0_9 = arith.constant 0 : index
    %c0_10 = arith.constant 0 : index
    %12 = vector.load %arg5[%c0_9, %c0_10] : memref<1x128xf32, #tpu.memory_space<vmem>>, vector<1x128xf32>
    %13 = vector.broadcast %12 : vector<1x128xf32> to vector<16x128xf32>
    %14 = arith.addf %11, %13 : vector<16x128xf32>
    %15 = arith.negf %14 : vector<16x128xf32>
    %16 = math.exp %15 : vector<16x128xf32>
    %cst_11 = arith.constant 1.000000e+00 : f32
    %17 = vector.broadcast %cst_11 : f32 to vector<16x128xf32>
    %18 = arith.addf %17, %16 : vector<16x128xf32>
    %19 = arith.divf %17, %18 : vector<16x128xf32>
    %20 = arith.truncf %19 : vector<16x128xf32> to vector<16x128xbf16>
    %c0_12 = arith.constant 0 : index
    %c0_13 = arith.constant 0 : index
    %21 = vector.load %arg6[%c0_12, %c0_13] : memref<16x128xbf16, #tpu.memory_space<vmem>>, vector<16x128xbf16>
    tpu.vector_store %arg6[%c0_12, %c0_13], %20 {strides = array<i32>} : memref<16x128xbf16, #tpu.memory_space<vmem>>, vector<16x128xbf16>,
    return
  }
  func.func @transform_0(%arg0: i32) -> (i32, i32) {
    %c0_i32 = arith.constant 0 : i32
    %c0_i32_0 = arith.constant 0 : i32
    return %arg0, %c0_i32 : i32, i32
  }
  func.func @transform_1(%arg0: i32) -> (i32, i32) {
    %c0_i32 = arith.constant 0 : i32
    %c0_i32_0 = arith.constant 0 : i32
    %c0_i32_1 = arith.constant 0 : i32
    return %c0_i32, %c0_i32_0 : i32, i32
  }
  func.func @transform_2(%arg0: i32) -> (i32, i32) {
    %c0_i32 = arith.constant 0 : i32
    %c0_i32_0 = arith.constant 0 : i32
    %c0_i32_1 = arith.constant 0 : i32
    return %c0_i32, %c0_i32_0 : i32, i32
  }
  func.func @transform_3(%arg0: i32) -> (i32, i32) {
    %c0_i32 = arith.constant 0 : i32
    %c0_i32_0 = arith.constant 0 : i32
    %c0_i32_1 = arith.constant 0 : i32
    return %c0_i32, %c0_i32_0 : i32, i32
  }
  func.func @transform_4(%arg0: i32) -> (i32, i32) {
    %c0_i32 = arith.constant 0 : i32
    %c0_i32_0 = arith.constant 0 : i32
    %c0_i32_1 = arith.constant 0 : i32
    return %c0_i32, %c0_i32_0 : i32, i32
  }
  func.func @transform_5(%arg0: i32) -> (i32, i32) {
    %c0_i32 = arith.constant 0 : i32
    %c0_i32_0 = arith.constant 0 : i32
    return %arg0, %c0_i32 : i32, i32
  }
}

</mosaic_0001>

<llo_original>
// kernel: tpu_custom_call.1
$region0: #{tpu_custom_call.1}
  #allocation0 [shape = 'u32[]', space=smem, size = 0x4, offset = 0x4, fixed_abs, tag = 'smem constant byte address 0x4 - core index']
  #allocation1 [shape = 'u32[144,128]{1,0:T(1,128)}', space=vmem, size = 0x12000, scoped, tag = 'internal scratch']
  %s0 = inlined_call_operand.hbm [shape: f32[16,1024], index: 0, kind: input, shape index: {}]
  %s1 = inlined_call_operand.hbm [shape: bf16[1024,512], index: 1, kind: input, shape index: {}]
  %s2 = inlined_call_operand.vmem [shape: f32[1,512], index: 2, kind: input, shape index: {}]
  %s3 = inlined_call_operand.hbm [shape: bf16[512,128], index: 3, kind: input, shape index: {}]
  %s4 = inlined_call_operand.vmem [shape: f32[1,128], index: 4, kind: input, shape index: {}]
  %s5 = inlined_call_operand.hbm [shape: bf16[16,128], index: 5, kind: output, shape index: {}]
  %s6 = sld [smem:[#allocation0]]
  $region42: #{tpu_custom_call.1} parent=0
    _
  %s8 = ssub.s32 1, %s6
  %s9 = scalar_select 0, %s8, %s6
  $region1: #{tpu_custom_call.1} parent=0
    #allocation2 [shape = 'u8[65536]{0}', space=vmem, size = 0x10000, scoped, tag = 'input window, operand 0, single buffered']
    #allocation3 [shape = 's32[1]{0}', space=sflag, size = 0x4, scoped, tag = 'scoped memory for tpu_custom_call.1']
    #allocation4 [shape = 's32[1]{0}', space=sflag, size = 0x4, scoped, tag = 'scoped memory for tpu_custom_call.1']
    #allocation5 [shape = 'u8[1048576]{0}', space=vmem, size = 0x100000, scoped, tag = 'input window, operand 1, single buffered']
    #allocation6 [shape = 's32[1]{0}', space=sflag, size = 0x4, scoped, tag = 'scoped memory for tpu_custom_call.1']
    #allocation7 [shape = 'u8[131072]{0}', space=vmem, size = 0x20000, scoped, tag = 'input window, operand 3, single buffered']
    #allocation8 [shape = 'u8[4096]{0}', space=vmem, size = 0x1000, scoped, tag = 'output window, operand 0, single buffered']
    %10 = vsyncpa [#allocation3], 0
    %11 = vsyncpa [#allocation6], 0
    %12 = vsyncpa [#allocation4], 0
    // Predicated region
    $region2: #{tpu_custom_call.1} parent=1 // pred_check
      _
    $region3: #{tpu_custom_call.1} parent=1 // pred_check_branch
      %14 = sbr.rel (0) target = $region5
    $region4: #{tpu_custom_call.1} parent=1 // pred_region
      %s16 = ssub.s32 2048, 2048
      %17 = vsyncadd [#allocation3], %s16
      %s18 = sshll.u32 [#allocation2], 4
      %s19 = int_to_ptr.vmem [resolvable:$true] %s18
      %24 = dma.hbm_to_vmem [thread:$0]  %s0, 2048, %s19, [#allocation3], 1024, 1024, 64
    $region5: #{tpu_custom_call.1} parent=1 // pred_fallthru
      _
    // Predicated region
    $region6: #{tpu_custom_call.1} parent=1 // pred_check
      _
    $region7: #{tpu_custom_call.1} parent=1 // pred_check_branch
      %26 = sbr.rel (0) target = $region9
    $region8: #{tpu_custom_call.1} parent=1 // pred_region
      %s28 = ssub.s32 32768, 32768
      %29 = vsyncadd [#allocation6], %s28
      %s30 = sshll.u32 [#allocation5], 4
      %s31 = int_to_ptr.vmem [resolvable:$true] %s30
      %36 = dma.hbm_to_vmem [thread:$0]  %s1, 32768, %s31, [#allocation6], 256, 256, 16
    $region9: #{tpu_custom_call.1} parent=1 // pred_fallthru
      _
    // Predicated region
    $region10: #{tpu_custom_call.1} parent=1 // pred_check
      _
    $region11: #{tpu_custom_call.1} parent=1 // pred_check_branch
      %38 = sbr.rel (0) target = $region13
    $region12: #{tpu_custom_call.1} parent=1 // pred_region
      _
    $region13: #{tpu_custom_call.1} parent=1 // pred_fallthru
      _
    // Predicated region
    $region14: #{tpu_custom_call.1} parent=1 // pred_check
      _
    $region15: #{tpu_custom_call.1} parent=1 // pred_check_branch
      %40 = sbr.rel (0) target = $region17
    $region16: #{tpu_custom_call.1} parent=1 // pred_region
      %s42 = ssub.s32 4096, 4096
      %43 = vsyncadd [#allocation6], %s42
      %s44 = sshll.u32 [#allocation7], 4
      %s45 = int_to_ptr.vmem [resolvable:$true] %s44
      %50 = dma.hbm_to_vmem [thread:$0]  %s3, 4096, %s45, [#allocation6], 64, 64, 4
    $region17: #{tpu_custom_call.1} parent=1 // pred_fallthru
      _
    // Predicated region
    $region18: #{tpu_custom_call.1} parent=1 // pred_check
      _
    $region19: #{tpu_custom_call.1} parent=1 // pred_check_branch
      %52 = sbr.rel (0) target = $region21
    $region20: #{tpu_custom_call.1} parent=1 // pred_region
      _
    $region21: #{tpu_custom_call.1} parent=1 // pred_fallthru
      _
    // Predicated region
    $region22: #{tpu_custom_call.1} parent=1 // pred_check
      _
    $region23: #{tpu_custom_call.1} parent=1 // pred_check_branch
      %54 = sbr.rel (0) target = $region25
    $region24: #{tpu_custom_call.1} parent=1 // pred_region
      %55 = dma.done [#allocation3], 2048
    $region25: #{tpu_custom_call.1} parent=1 // pred_fallthru
      _
    // Predicated region
    $region26: #{tpu_custom_call.1} parent=1 // pred_check
      _
    $region27: #{tpu_custom_call.1} parent=1 // pred_check_branch
      %57 = sbr.rel (0) target = $region29
    $region28: #{tpu_custom_call.1} parent=1 // pred_region
      %58 = dma.done [#allocation6], 32768
    $region29: #{tpu_custom_call.1} parent=1 // pred_fallthru
      _
    // Predicated region
    $region30: #{tpu_custom_call.1} parent=1 // pred_check
      _
    $region31: #{tpu_custom_call.1} parent=1 // pred_check_branch
      %60 = sbr.rel (0) target = $region33
    $region32: #{tpu_custom_call.1} parent=1 // pred_region
      %61 = dma.done [#allocation6], 4096
    $region33: #{tpu_custom_call.1} parent=1 // pred_fallthru
      _
    %v63 = vld [vmem:[#allocation2] sm:$0xff]
    %v64 = vld [vmem:[#allocation2 + $0x8] sm:$0xff]
    %v65 = vld [vmem:[#allocation2 + $0x10] sm:$0xff]
    %v66 = vld [vmem:[#allocation2 + $0x18] sm:$0xff]
    %v67 = vld [vmem:[#allocation2 + $0x20] sm:$0xff]
    %v68 = vld [vmem:[#allocation2 + $0x28] sm:$0xff]
    %v69 = vld [vmem:[#allocation2 + $0x30] sm:$0xff]
    %v70 = vld [vmem:[#allocation2 + $0x38] sm:$0xff]
    %v71 = vld [vmem:[#allocation2 + $0x40] sm:$0xff]
    %v72 = vld [vmem:[#allocation2 + $0x48] sm:$0xff]
    %v73 = vld [vmem:[#allocation2 + $0x50] sm:$0xff]
    %v74 = vld [vmem:[#allocation2 + $0x58] sm:$0xff]
    %v75 = vld [vmem:[#allocation2 + $0x60] sm:$0xff]
    %v76 = vld [vmem:[#allocation2 + $0x68] sm:$0xff]
    %v77 = vld [vmem:[#allocation2 + $0x70] sm:$0xff]
    %v78 = vld [vmem:[#allocation2 + $0x78] sm:$0xff]
    %v79 = vpack.c.bf16 %v71, %v63
    %v80 = vpack.c.bf16 %v72, %v64
    %v81 = vpack.c.bf16 %v73, %v65
    %v82 = vpack.c.bf16 %v74, %v66
    %v83 = vpack.c.bf16 %v75, %v67
    %v84 = vpack.c.bf16 %v76, %v68
    %v85 = vpack.c.bf16 %v77, %v69
    %v86 = vpack.c.bf16 %v78, %v70
    %v87 = vld [vmem:[#allocation5] sm:$0xff]
    %v88 = vld [vmem:[#allocation5 + $0x8] sm:$0xff]
    %v89 = vld [vmem:[#allocation5 + $0x10] sm:$0xff]
    %v90 = vld [vmem:[#allocation5 + $0x18] sm:$0xff]
    %v91 = vld [vmem:[#allocation5 + $0x20] sm:$0xff]
    %v92 = vld [vmem:[#allocation5 + $0x28] sm:$0xff]
    %v93 = vld [vmem:[#allocation5 + $0x30] sm:$0xff]
    %v94 = vld [vmem:[#allocation5 + $0x38] sm:$0xff]
    %v95 = vld [vmem:[#allocation5 + $0x40] sm:$0xff]
    %v96 = vld [vmem:[#allocation5 + $0x48] sm:$0xff]
    %v97 = vld [vmem:[#allocation5 + $0x50] sm:$0xff]
    %v98 = vld [vmem:[#allocation5 + $0x58] sm:$0xff]
    %v99 = vld [vmem:[#allocation5 + $0x60] sm:$0xff]
    %v100 = vld [vmem:[#allocation5 + $0x68] sm:$0xff]
    %v101 = vld [vmem:[#allocation5 + $0x70] sm:$0xff]
    %v102 = vld [vmem:[#allocation5 + $0x78] sm:$0xff]
    %v103 = vld [vmem:[#allocation5 + $0x80] sm:$0xff]
    %v104 = vld [vmem:[#allocation5 + $0x88] sm:$0xff]
    %v105 = vld [vmem:[#allocation5 + $0x90] sm:$0xff]
    %v106 = vld [vmem:[#allocation5 + $0x98] sm:$0xff]
    %v107 = vld [vmem:[#allocation5 + $0xa0] sm:$0xff]
    %v108 = vld [vmem:[#allocation5 + $0xa8] sm:$0xff]
    %v109 = vld [vmem:[#allocation5 + $0xb0] sm:$0xff]
    %v110 = vld [vmem:[#allocation5 + $0xb8] sm:$0xff]
    %v111 = vld [vmem:[#allocation5 + $0xc0] sm:$0xff]
    %v112 = vld [vmem:[#allocation5 + $0xc8] sm:$0xff]
    %v113 = vld [vmem:[#allocation5 + $0xd0] sm:$0xff]
    %v114 = vld [vmem:[#allocation5 + $0xd8] sm:$0xff]
    %v115 = vld [vmem:[#allocation5 + $0xe0] sm:$0xff]
    %v116 = vld [vmem:[#allocation5 + $0xe8] sm:$0xff]
    %v117 = vld [vmem:[#allocation5 + $0xf0] sm:$0xff]
    %v118 = vld [vmem:[#allocation5 + $0xf8] sm:$0xff]
    %v119 = vld [vmem:[#allocation5 + $0x100] sm:$0xff]
    %v120 = vld [vmem:[#allocation5 + $0x108] sm:$0xff]
    %v121 = vld [vmem:[#allocation5 + $0x110] sm:$0xff]
    %v122 = vld [vmem:[#allocation5 + $0x118] sm:$0xff]
    %v123 = vld [vmem:[#allocation5 + $0x120] sm:$0xff]
    %v124 = vld [vmem:[#allocation5 + $0x128] sm:$0xff]
    %v125 = vld [vmem:[#allocation5 + $0x130] sm:$0xff]
    %v126 = vld [vmem:[#allocation5 + $0x138] sm:$0xff]
    %v127 = vld [vmem:[#allocation5 + $0x140] sm:$0xff]
    %v128 = vld [vmem:[#allocation5 + $0x148] sm:$0xff]
    %v129 = vld [vmem:[#allocation5 + $0x150] sm:$0xff]
    %v130 = vld [vmem:[#allocation5 + $0x158] sm:$0xff]
    %v131 = vld [vmem:[#allocation5 + $0x160] sm:$0xff]
    %v132 = vld [vmem:[#allocation5 + $0x168] sm:$0xff]
    %v133 = vld [vmem:[#allocation5 + $0x170] sm:$0xff]
    %v134 = vld [vmem:[#allocation5 + $0x178] sm:$0xff]
    %v135 = vld [vmem:[#allocation5 + $0x180] sm:$0xff]
    %v136 = vld [vmem:[#allocation5 + $0x188] sm:$0xff]
    %v137 = vld [vmem:[#allocation5 + $0x190] sm:$0xff]
    %v138 = vld [vmem:[#allocation5 + $0x198] sm:$0xff]
    %v139 = vld [vmem:[#allocation5 + $0x1a0] sm:$0xff]
    %v140 = vld [vmem:[#allocation5 + $0x1a8] sm:$0xff]
    %v141 = vld [vmem:[#allocation5 + $0x1b0] sm:$0xff]
    %v142 = vld [vmem:[#allocation5 + $0x1b8] sm:$0xff]
    %v143 = vld [vmem:[#allocation5 + $0x1c0] sm:$0xff]
    %v144 = vld [vmem:[#allocation5 + $0x1c8] sm:$0xff]
    %v145 = vld [vmem:[#allocation5 + $0x1d0] sm:$0xff]
    %v146 = vld [vmem:[#allocation5 + $0x1d8] sm:$0xff]
    %v147 = vld [vmem:[#allocation5 + $0x1e0] sm:$0xff]
    %v148 = vld [vmem:[#allocation5 + $0x1e8] sm:$0xff]
    %v149 = vld [vmem:[#allocation5 + $0x1f0] sm:$0xff]
    %v150 = vld [vmem:[#allocation5 + $0x1f8] sm:$0xff]
    %v151 = vld [vmem:[#allocation5 + $0x200] sm:$0xff]
    %v152 = vld [vmem:[#allocation5 + $0x208] sm:$0xff]
    %v153 = vld [vmem:[#allocation5 + $0x210] sm:$0xff]
    %v154 = vld [vmem:[#allocation5 + $0x218] sm:$0xff]
    %v155 = vld [vmem:[#allocation5 + $0x220] sm:$0xff]
    %v156 = vld [vmem:[#allocation5 + $0x228] sm:$0xff]
    %v157 = vld [vmem:[#allocation5 + $0x230] sm:$0xff]
    %v158 = vld [vmem:[#allocation5 + $0x238] sm:$0xff]
    %v159 = vld [vmem:[#allocation5 + $0x240] sm:$0xff]
    %v160 = vld [vmem:[#allocation5 + $0x248] sm:$0xff]
    %v161 = vld [vmem:[#allocation5 + $0x250] sm:$0xff]
    %v162 = vld [vmem:[#allocation5 + $0x258] sm:$0xff]
    %v163 = vld [vmem:[#allocation5 + $0x260] sm:$0xff]
    %v164 = vld [vmem:[#allocation5 + $0x268] sm:$0xff]
    %v165 = vld [vmem:[#allocation5 + $0x270] sm:$0xff]
    %v166 = vld [vmem:[#allocation5 + $0x278] sm:$0xff]
    %v167 = vld [vmem:[#allocation5 + $0x280] sm:$0xff]
    %v168 = vld [vmem:[#allocation5 + $0x288] sm:$0xff]
    %v169 = vld [vmem:[#allocation5 + $0x290] sm:$0xff]
    %v170 = vld [vmem:[#allocation5 + $0x298] sm:$0xff]
    %v171 = vld [vmem:[#allocation5 + $0x2a0] sm:$0xff]
    %v172 = vld [vmem:[#allocation5 + $0x2a8] sm:$0xff]
    %v173 = vld [vmem:[#allocation5 + $0x2b0] sm:$0xff]
    %v174 = vld [vmem:[#allocation5 + $0x2b8] sm:$0xff]
    %v175 = vld [vmem:[#allocation5 + $0x2c0] sm:$0xff]
    %v176 = vld [vmem:[#allocation5 + $0x2c8] sm:$0xff]
    %v177 = vld [vmem:[#allocation5 + $0x2d0] sm:$0xff]
    %v178 = vld [vmem:[#allocation5 + $0x2d8] sm:$0xff]
    %v179 = vld [vmem:[#allocation5 + $0x2e0] sm:$0xff]
    %v180 = vld [vmem:[#allocation5 + $0x2e8] sm:$0xff]
    %v181 = vld [vmem:[#allocation5 + $0x2f0] sm:$0xff]
    %v182 = vld [vmem:[#allocation5 + $0x2f8] sm:$0xff]
    %v183 = vld [vmem:[#allocation5 + $0x300] sm:$0xff]
    %v184 = vld [vmem:[#allocation5 + $0x308] sm:$0xff]
    %v185 = vld [vmem:[#allocation5 + $0x310] sm:$0xff]
    %v186 = vld [vmem:[#allocation5 + $0x318] sm:$0xff]
    %v187 = vld [vmem:[#allocation5 + $0x320] sm:$0xff]
    %v188 = vld [vmem:[#allocation5 + $0x328] sm:$0xff]
    %v189 = vld [vmem:[#allocation5 + $0x330] sm:$0xff]
    %v190 = vld [vmem:[#allocation5 + $0x338] sm:$0xff]
    %v191 = vld [vmem:[#allocation5 + $0x340] sm:$0xff]
    %v192 = vld [vmem:[#allocation5 + $0x348] sm:$0xff]
    %v193 = vld [vmem:[#allocation5 + $0x350] sm:$0xff]
    %v194 = vld [vmem:[#allocation5 + $0x358] sm:$0xff]
    %v195 = vld [vmem:[#allocation5 + $0x360] sm:$0xff]
    %v196 = vld [vmem:[#allocation5 + $0x368] sm:$0xff]
    %v197 = vld [vmem:[#allocation5 + $0x370] sm:$0xff]
    %v198 = vld [vmem:[#allocation5 + $0x378] sm:$0xff]
    %v199 = vld [vmem:[#allocation5 + $0x380] sm:$0xff]
    %v200 = vld [vmem:[#allocation5 + $0x388] sm:$0xff]
    %v201 = vld [vmem:[#allocation5 + $0x390] sm:$0xff]
    %v202 = vld [vmem:[#allocation5 + $0x398] sm:$0xff]
    %v203 = vld [vmem:[#allocation5 + $0x3a0] sm:$0xff]
    %v204 = vld [vmem:[#allocation5 + $0x3a8] sm:$0xff]
    %v205 = vld [vmem:[#allocation5 + $0x3b0] sm:$0xff]
    %v206 = vld [vmem:[#allocation5 + $0x3b8] sm:$0xff]
    %v207 = vld [vmem:[#allocation5 + $0x3c0] sm:$0xff]
    %v208 = vld [vmem:[#allocation5 + $0x3c8] sm:$0xff]
    %v209 = vld [vmem:[#allocation5 + $0x3d0] sm:$0xff]
    %v210 = vld [vmem:[#allocation5 + $0x3d8] sm:$0xff]
    %v211 = vld [vmem:[#allocation5 + $0x3e0] sm:$0xff]
    %v212 = vld [vmem:[#allocation5 + $0x3e8] sm:$0xff]
    %v213 = vld [vmem:[#allocation5 + $0x3f0] sm:$0xff]
    %v214 = vld [vmem:[#allocation5 + $0x3f8] sm:$0xff]
    %v215 = vld [vmem:[#allocation5 + $0x400] sm:$0xff]
    %v216 = vld [vmem:[#allocation5 + $0x408] sm:$0xff]
    %v217 = vld [vmem:[#allocation5 + $0x410] sm:$0xff]
    %v218 = vld [vmem:[#allocation5 + $0x418] sm:$0xff]
    %v219 = vld [vmem:[#allocation5 + $0x420] sm:$0xff]
    %v220 = vld [vmem:[#allocation5 + $0x428] sm:$0xff]
    %v221 = vld [vmem:[#allocation5 + $0x430] sm:$0xff]
    %v222 = vld [vmem:[#allocation5 + $0x438] sm:$0xff]
    %v223 = vld [vmem:[#allocation5 + $0x440] sm:$0xff]
    %v224 = vld [vmem:[#allocation5 + $0x448] sm:$0xff]
    %v225 = vld [vmem:[#allocation5 + $0x450] sm:$0xff]
    %v226 = vld [vmem:[#allocation5 + $0x458] sm:$0xff]
    %v227 = vld [vmem:[#allocation5 + $0x460] sm:$0xff]
    %v228 = vld [vmem:[#allocation5 + $0x468] sm:$0xff]
    %v229 = vld [vmem:[#allocation5 + $0x470] sm:$0xff]
    %v230 = vld [vmem:[#allocation5 + $0x478] sm:$0xff]
    %v231 = vld [vmem:[#allocation5 + $0x480] sm:$0xff]
    %v232 = vld [vmem:[#allocation5 + $0x488] sm:$0xff]
    %v233 = vld [vmem:[#allocation5 + $0x490] sm:$0xff]
    %v234 = vld [vmem:[#allocation5 + $0x498] sm:$0xff]
    %v235 = vld [vmem:[#allocation5 + $0x4a0] sm:$0xff]
    %v236 = vld [vmem:[#allocation5 + $0x4a8] sm:$0xff]
    %v237 = vld [vmem:[#allocation5 + $0x4b0] sm:$0xff]
    %v238 = vld [vmem:[#allocation5 + $0x4b8] sm:$0xff]
    %v239 = vld [vmem:[#allocation5 + $0x4c0] sm:$0xff]
    %v240 = vld [vmem:[#allocation5 + $0x4c8] sm:$0xff]
    %v241 = vld [vmem:[#allocation5 + $0x4d0] sm:$0xff]
    %v242 = vld [vmem:[#allocation5 + $0x4d8] sm:$0xff]
    %v243 = vld [vmem:[#allocation5 + $0x4e0] sm:$0xff]
    %v244 = vld [vmem:[#allocation5 + $0x4e8] sm:$0xff]
    %v245 = vld [vmem:[#allocation5 + $0x4f0] sm:$0xff]
    %v246 = vld [vmem:[#allocation5 + $0x4f8] sm:$0xff]
    %v247 = vld [vmem:[#allocation5 + $0x500] sm:$0xff]
    %v248 = vld [vmem:[#allocation5 + $0x508] sm:$0xff]
    %v249 = vld [vmem:[#allocation5 + $0x510] sm:$0xff]
    %v250 = vld [vmem:[#allocation5 + $0x518] sm:$0xff]
    %v251 = vld [vmem:[#allocation5 + $0x520] sm:$0xff]
    %v252 = vld [vmem:[#allocation5 + $0x528] sm:$0xff]
    %v253 = vld [vmem:[#allocation5 + $0x530] sm:$0xff]
    %v254 = vld [vmem:[#allocation5 + $0x538] sm:$0xff]
    %v255 = vld [vmem:[#allocation5 + $0x540] sm:$0xff]
    %v256 = vld [vmem:[#allocation5 + $0x548] sm:$0xff]
    %v257 = vld [vmem:[#allocation5 + $0x550] sm:$0xff]
    %v258 = vld [vmem:[#allocation5 + $0x558] sm:$0xff]
    %v259 = vld [vmem:[#allocation5 + $0x560] sm:$0xff]
    %v260 = vld [vmem:[#allocation5 + $0x568] sm:$0xff]
    %v261 = vld [vmem:[#allocation5 + $0x570] sm:$0xff]
    %v262 = vld [vmem:[#allocation5 + $0x578] sm:$0xff]
    %v263 = vld [vmem:[#allocation5 + $0x580] sm:$0xff]
    %v264 = vld [vmem:[#allocation5 + $0x588] sm:$0xff]
    %v265 = vld [vmem:[#allocation5 + $0x590] sm:$0xff]
    %v266 = vld [vmem:[#allocation5 + $0x598] sm:$0xff]
    %v267 = vld [vmem:[#allocation5 + $0x5a0] sm:$0xff]
    %v268 = vld [vmem:[#allocation5 + $0x5a8] sm:$0xff]
    %v269 = vld [vmem:[#allocation5 + $0x5b0] sm:$0xff]
    %v270 = vld [vmem:[#allocation5 + $0x5b8] sm:$0xff]
    %v271 = vld [vmem:[#allocation5 + $0x5c0] sm:$0xff]
    %v272 = vld [vmem:[#allocation5 + $0x5c8] sm:$0xff]
    %v273 = vld [vmem:[#allocation5 + $0x5d0] sm:$0xff]
    %v274 = vld [vmem:[#allocation5 + $0x5d8] sm:$0xff]
    %v275 = vld [vmem:[#allocation5 + $0x5e0] sm:$0xff]
    %v276 = vld [vmem:[#allocation5 + $0x5e8] sm:$0xff]
    %v277 = vld [vmem:[#allocation5 + $0x5f0] sm:$0xff]
    %v278 = vld [vmem:[#allocation5 + $0x5f8] sm:$0xff]
    %v279 = vld [vmem:[#allocation5 + $0x600] sm:$0xff]
    %v280 = vld [vmem:[#allocation5 + $0x608] sm:$0xff]
    %v281 = vld [vmem:[#allocation5 + $0x610] sm:$0xff]
    %v282 = vld [vmem:[#allocation5 + $0x618] sm:$0xff]
    %v283 = vld [vmem:[#allocation5 + $0x620] sm:$0xff]
    %v284 = vld [vmem:[#allocation5 + $0x628] sm:$0xff]
    %v285 = vld [vmem:[#allocation5 + $0x630] sm:$0xff]
    %v286 = vld [vmem:[#allocation5 + $0x638] sm:$0xff]
    %v287 = vld [vmem:[#allocation5 + $0x640] sm:$0xff]
    %v288 = vld [vmem:[#allocation5 + $0x648] sm:$0xff]
    %v289 = vld [vmem:[#allocation5 + $0x650] sm:$0xff]
    %v290 = vld [vmem:[#allocation5 + $0x658] sm:$0xff]
    %v291 = vld [vmem:[#allocation5 + $0x660] sm:$0xff]
    %v292 = vld [vmem:[#allocation5 + $0x668] sm:$0xff]
    %v293 = vld [vmem:[#allocation5 + $0x670] sm:$0xff]
    %v294 = vld [vmem:[#allocation5 + $0x678] sm:$0xff]
    %v295 = vld [vmem:[#allocation5 + $0x680] sm:$0xff]
    %v296 = vld [vmem:[#allocation5 + $0x688] sm:$0xff]
    %v297 = vld [vmem:[#allocation5 + $0x690] sm:$0xff]
    %v298 = vld [vmem:[#allocation5 + $0x698] sm:$0xff]
    %v299 = vld [vmem:[#allocation5 + $0x6a0] sm:$0xff]
    %v300 = vld [vmem:[#allocation5 + $0x6a8] sm:$0xff]
    %v301 = vld [vmem:[#allocation5 + $0x6b0] sm:$0xff]
    %v302 = vld [vmem:[#allocation5 + $0x6b8] sm:$0xff]
    %v303 = vld [vmem:[#allocation5 + $0x6c0] sm:$0xff]
    %v304 = vld [vmem:[#allocation5 + $0x6c8] sm:$0xff]
    %v305 = vld [vmem:[#allocation5 + $0x6d0] sm:$0xff]
    %v306 = vld [vmem:[#allocation5 + $0x6d8] sm:$0xff]
    %v307 = vld [vmem:[#allocation5 + $0x6e0] sm:$0xff]
    %v308 = vld [vmem:[#allocation5 + $0x6e8] sm:$0xff]
    %v309 = vld [vmem:[#allocation5 + $0x6f0] sm:$0xff]
    %v310 = vld [vmem:[#allocation5 + $0x6f8] sm:$0xff]
    %v311 = vld [vmem:[#allocation5 + $0x700] sm:$0xff]
    %v312 = vld [vmem:[#allocation5 + $0x708] sm:$0xff]
    %v313 = vld [vmem:[#allocation5 + $0x710] sm:$0xff]
    %v314 = vld [vmem:[#allocation5 + $0x718] sm:$0xff]
    %v315 = vld [vmem:[#allocation5 + $0x720] sm:$0xff]
    %v316 = vld [vmem:[#allocation5 + $0x728] sm:$0xff]
    %v317 = vld [vmem:[#allocation5 + $0x730] sm:$0xff]
    %v318 = vld [vmem:[#allocation5 + $0x738] sm:$0xff]
    %v319 = vld [vmem:[#allocation5 + $0x740] sm:$0xff]
    %v320 = vld [vmem:[#allocation5 + $0x748] sm:$0xff]
    %v321 = vld [vmem:[#allocation5 + $0x750] sm:$0xff]
    %v322 = vld [vmem:[#allocation5 + $0x758] sm:$0xff]
    %v323 = vld [vmem:[#allocation5 + $0x760] sm:$0xff]
    %v324 = vld [vmem:[#allocation5 + $0x768] sm:$0xff]
    %v325 = vld [vmem:[#allocation5 + $0x770] sm:$0xff]
    %v326 = vld [vmem:[#allocation5 + $0x778] sm:$0xff]
    %v327 = vld [vmem:[#allocation5 + $0x780] sm:$0xff]
    %v328 = vld [vmem:[#allocation5 + $0x788] sm:$0xff]
    %v329 = vld [vmem:[#allocation5 + $0x790] sm:$0xff]
    %v330 = vld [vmem:[#allocation5 + $0x798] sm:$0xff]
    %v331 = vld [vmem:[#allocation5 + $0x7a0] sm:$0xff]
    %v332 = vld [vmem:[#allocation5 + $0x7a8] sm:$0xff]
    %v333 = vld [vmem:[#allocation5 + $0x7b0] sm:$0xff]
    %v334 = vld [vmem:[#allocation5 + $0x7b8] sm:$0xff]
    %v335 = vld [vmem:[#allocation5 + $0x7c0] sm:$0xff]
    %v336 = vld [vmem:[#allocation5 + $0x7c8] sm:$0xff]
    %v337 = vld [vmem:[#allocation5 + $0x7d0] sm:$0xff]
    %v338 = vld [vmem:[#allocation5 + $0x7d8] sm:$0xff]
    %v339 = vld [vmem:[#allocation5 + $0x7e0] sm:$0xff]
    %v340 = vld [vmem:[#allocation5 + $0x7e8] sm:$0xff]
    %v341 = vld [vmem:[#allocation5 + $0x7f0] sm:$0xff]
    %v342 = vld [vmem:[#allocation5 + $0x7f8] sm:$0xff]
    %v343 = vld [vmem:[%s2] sm:$0xf]
    %v345 = vlaneseq
    %v346 = vshrl.u32 %v345, 7
    %v347 = vsub.s32 0, %v346
    %v348 = vrot.slane %v343, %v347
    %v349 = vlaneseq
    %v350 = vshrl.u32 %v349, 7
    %v351 = vsub.s32 1, %v350
    %v352 = vrot.slane %v343, %v351
    %v353 = vlaneseq
    %v354 = vshrl.u32 %v353, 7
    %v355 = vsub.s32 2, %v354
    %v356 = vrot.slane %v343, %v355
    %v357 = vlaneseq
    %v358 = vshrl.u32 %v357, 7
    %v359 = vsub.s32 3, %v358
    %v360 = vrot.slane %v343, %v359
    %v621 = vunpack.c.l.b16 %v87
    %v622 = vunpack.c.h.b16 %v87
    %v623 = vunpack.c.l.b16 %v88
    %v624 = vunpack.c.h.b16 %v88
    %v625 = vunpack.c.l.b16 %v89
    %v626 = vunpack.c.h.b16 %v89
    %v627 = vunpack.c.l.b16 %v90
    %v628 = vunpack.c.h.b16 %v90
    %v629 = vunpack.c.l.b16 %v91
    %v630 = vunpack.c.h.b16 %v91
    %v631 = vunpack.c.l.b16 %v92
    %v632 = vunpack.c.h.b16 %v92
    %v633 = vunpack.c.l.b16 %v93
    %v634 = vunpack.c.h.b16 %v93
    %v635 = vunpack.c.l.b16 %v94
    %v636 = vunpack.c.h.b16 %v94
    %v637 = vunpack.c.l.b16 %v95
    %v638 = vunpack.c.h.b16 %v95
    %v639 = vunpack.c.l.b16 %v96
    %v640 = vunpack.c.h.b16 %v96
    %v641 = vunpack.c.l.b16 %v97
    %v642 = vunpack.c.h.b16 %v97
    %v643 = vunpack.c.l.b16 %v98
    %v644 = vunpack.c.h.b16 %v98
    %v645 = vunpack.c.l.b16 %v99
    %v646 = vunpack.c.h.b16 %v99
    %v647 = vunpack.c.l.b16 %v100
    %v648 = vunpack.c.h.b16 %v100
    %v649 = vunpack.c.l.b16 %v101
    %v650 = vunpack.c.h.b16 %v101
    %v651 = vunpack.c.l.b16 %v102
    %v652 = vunpack.c.h.b16 %v102
    %v653 = vunpack.c.l.b16 %v103
    %v654 = vunpack.c.h.b16 %v103
    %v655 = vunpack.c.l.b16 %v104
    %v656 = vunpack.c.h.b16 %v104
    %v657 = vunpack.c.l.b16 %v105
    %v658 = vunpack.c.h.b16 %v105
    %v659 = vunpack.c.l.b16 %v106
    %v660 = vunpack.c.h.b16 %v106
    %v661 = vunpack.c.l.b16 %v107
    %v662 = vunpack.c.h.b16 %v107
    %v663 = vunpack.c.l.b16 %v108
    %v664 = vunpack.c.h.b16 %v108
    %v665 = vunpack.c.l.b16 %v109
    %v666 = vunpack.c.h.b16 %v109
    %v667 = vunpack.c.l.b16 %v110
    %v668 = vunpack.c.h.b16 %v110
    %v669 = vunpack.c.l.b16 %v111
    %v670 = vunpack.c.h.b16 %v111
    %v671 = vunpack.c.l.b16 %v112
    %v672 = vunpack.c.h.b16 %v112
    %v673 = vunpack.c.l.b16 %v113
    %v674 = vunpack.c.h.b16 %v113
    %v675 = vunpack.c.l.b16 %v114
    %v676 = vunpack.c.h.b16 %v114
    %v677 = vunpack.c.l.b16 %v115
    %v678 = vunpack.c.h.b16 %v115
    %v679 = vunpack.c.l.b16 %v116
    %v680 = vunpack.c.h.b16 %v116
    %v681 = vunpack.c.l.b16 %v117
    %v682 = vunpack.c.h.b16 %v117
    %v683 = vunpack.c.l.b16 %v118
    %v684 = vunpack.c.h.b16 %v118
    %v685 = vunpack.c.l.b16 %v119
    %v686 = vunpack.c.h.b16 %v119
    %v687 = vunpack.c.l.b16 %v120
    %v688 = vunpack.c.h.b16 %v120
    %v689 = vunpack.c.l.b16 %v121
    %v690 = vunpack.c.h.b16 %v121
    %v691 = vunpack.c.l.b16 %v122
    %v692 = vunpack.c.h.b16 %v122
    %v693 = vunpack.c.l.b16 %v123
    %v694 = vunpack.c.h.b16 %v123
    %v695 = vunpack.c.l.b16 %v124
    %v696 = vunpack.c.h.b16 %v124
    %v697 = vunpack.c.l.b16 %v125
    %v698 = vunpack.c.h.b16 %v125
    %v699 = vunpack.c.l.b16 %v126
    %v700 = vunpack.c.h.b16 %v126
    %v701 = vunpack.c.l.b16 %v127
    %v702 = vunpack.c.h.b16 %v127
    %v703 = vunpack.c.l.b16 %v128
    %v704 = vunpack.c.h.b16 %v128
    %v705 = vunpack.c.l.b16 %v129
    %v706 = vunpack.c.h.b16 %v129
    %v707 = vunpack.c.l.b16 %v130
    %v708 = vunpack.c.h.b16 %v130
    %v709 = vunpack.c.l.b16 %v131
    %v710 = vunpack.c.h.b16 %v131
    %v711 = vunpack.c.l.b16 %v132
    %v712 = vunpack.c.h.b16 %v132
    %v713 = vunpack.c.l.b16 %v133
    %v714 = vunpack.c.h.b16 %v133
    %v715 = vunpack.c.l.b16 %v134
    %v716 = vunpack.c.h.b16 %v134
    %v717 = vunpack.c.l.b16 %v135
    %v718 = vunpack.c.h.b16 %v135
    %v719 = vunpack.c.l.b16 %v136
    %v720 = vunpack.c.h.b16 %v136
    %v721 = vunpack.c.l.b16 %v137
    %v722 = vunpack.c.h.b16 %v137
    %v723 = vunpack.c.l.b16 %v138
    %v724 = vunpack.c.h.b16 %v138
    %v725 = vunpack.c.l.b16 %v139
    %v726 = vunpack.c.h.b16 %v139
    %v727 = vunpack.c.l.b16 %v140
    %v728 = vunpack.c.h.b16 %v140
    %v729 = vunpack.c.l.b16 %v141
    %v730 = vunpack.c.h.b16 %v141
    %v731 = vunpack.c.l.b16 %v142
    %v732 = vunpack.c.h.b16 %v142
    %v733 = vunpack.c.l.b16 %v143
    %v734 = vunpack.c.h.b16 %v143
    %v735 = vunpack.c.l.b16 %v144
    %v736 = vunpack.c.h.b16 %v144
    %v737 = vunpack.c.l.b16 %v145
    %v738 = vunpack.c.h.b16 %v145
    %v739 = vunpack.c.l.b16 %v146
    %v740 = vunpack.c.h.b16 %v146
    %v741 = vunpack.c.l.b16 %v147
    %v742 = vunpack.c.h.b16 %v147
    %v743 = vunpack.c.l.b16 %v148
    %v744 = vunpack.c.h.b16 %v148
    %v745 = vunpack.c.l.b16 %v149
    %v746 = vunpack.c.h.b16 %v149
    %v747 = vunpack.c.l.b16 %v150
    %v748 = vunpack.c.h.b16 %v150
    %v749 = vunpack.c.l.b16 %v151
    %v750 = vunpack.c.h.b16 %v151
    %v751 = vunpack.c.l.b16 %v152
    %v752 = vunpack.c.h.b16 %v152
    %v753 = vunpack.c.l.b16 %v153
    %v754 = vunpack.c.h.b16 %v153
    %v755 = vunpack.c.l.b16 %v154
    %v756 = vunpack.c.h.b16 %v154
    %v757 = vunpack.c.l.b16 %v155
    %v758 = vunpack.c.h.b16 %v155
    %v759 = vunpack.c.l.b16 %v156
    %v760 = vunpack.c.h.b16 %v156
    %v761 = vunpack.c.l.b16 %v157
    %v762 = vunpack.c.h.b16 %v157
    %v763 = vunpack.c.l.b16 %v158
    %v764 = vunpack.c.h.b16 %v158
    %v765 = vunpack.c.l.b16 %v159
    %v766 = vunpack.c.h.b16 %v159
    %v767 = vunpack.c.l.b16 %v160
    %v768 = vunpack.c.h.b16 %v160
    %v769 = vunpack.c.l.b16 %v161
    %v770 = vunpack.c.h.b16 %v161
    %v771 = vunpack.c.l.b16 %v162
    %v772 = vunpack.c.h.b16 %v162
    %v773 = vunpack.c.l.b16 %v163
    %v774 = vunpack.c.h.b16 %v163
    %v775 = vunpack.c.l.b16 %v164
    %v776 = vunpack.c.h.b16 %v164
    %v777 = vunpack.c.l.b16 %v165
    %v778 = vunpack.c.h.b16 %v165
    %v779 = vunpack.c.l.b16 %v166
    %v780 = vunpack.c.h.b16 %v166
    %v781 = vunpack.c.l.b16 %v167
    %v782 = vunpack.c.h.b16 %v167
    %v783 = vunpack.c.l.b16 %v168
    %v784 = vunpack.c.h.b16 %v168
    %v785 = vunpack.c.l.b16 %v169
    %v786 = vunpack.c.h.b16 %v169
    %v787 = vunpack.c.l.b16 %v170
    %v788 = vunpack.c.h.b16 %v170
    %v789 = vunpack.c.l.b16 %v171
    %v790 = vunpack.c.h.b16 %v171
    %v791 = vunpack.c.l.b16 %v172
    %v792 = vunpack.c.h.b16 %v172
    %v793 = vunpack.c.l.b16 %v173
    %v794 = vunpack.c.h.b16 %v173
    %v795 = vunpack.c.l.b16 %v174
    %v796 = vunpack.c.h.b16 %v174
    %v797 = vunpack.c.l.b16 %v175
    %v798 = vunpack.c.h.b16 %v175
    %v799 = vunpack.c.l.b16 %v176
    %v800 = vunpack.c.h.b16 %v176
    %v801 = vunpack.c.l.b16 %v177
    %v802 = vunpack.c.h.b16 %v177
    %v803 = vunpack.c.l.b16 %v178
    %v804 = vunpack.c.h.b16 %v178
    %v805 = vunpack.c.l.b16 %v179
    %v806 = vunpack.c.h.b16 %v179
    %v807 = vunpack.c.l.b16 %v180
    %v808 = vunpack.c.h.b16 %v180
    %v809 = vunpack.c.l.b16 %v181
    %v810 = vunpack.c.h.b16 %v181
    %v811 = vunpack.c.l.b16 %v182
    %v812 = vunpack.c.h.b16 %v182
    %v813 = vunpack.c.l.b16 %v183
    %v814 = vunpack.c.h.b16 %v183
    %v815 = vunpack.c.l.b16 %v184
    %v816 = vunpack.c.h.b16 %v184
    %v817 = vunpack.c.l.b16 %v185
    %v818 = vunpack.c.h.b16 %v185
    %v819 = vunpack.c.l.b16 %v186
    %v820 = vunpack.c.h.b16 %v186
    %v821 = vunpack.c.l.b16 %v187
    %v822 = vunpack.c.h.b16 %v187
    %v823 = vunpack.c.l.b16 %v188
    %v824 = vunpack.c.h.b16 %v188
    %v825 = vunpack.c.l.b16 %v189
    %v826 = vunpack.c.h.b16 %v189
    %v827 = vunpack.c.l.b16 %v190
    %v828 = vunpack.c.h.b16 %v190
    %v829 = vunpack.c.l.b16 %v191
    %v830 = vunpack.c.h.b16 %v191
    %v831 = vunpack.c.l.b16 %v192
    %v832 = vunpack.c.h.b16 %v192
    %v833 = vunpack.c.l.b16 %v193
    %v834 = vunpack.c.h.b16 %v193
    %v835 = vunpack.c.l.b16 %v194
    %v836 = vunpack.c.h.b16 %v194
    %v837 = vunpack.c.l.b16 %v195
    %v838 = vunpack.c.h.b16 %v195
    %v839 = vunpack.c.l.b16 %v196
    %v840 = vunpack.c.h.b16 %v196
    %v841 = vunpack.c.l.b16 %v197
    %v842 = vunpack.c.h.b16 %v197
    %v843 = vunpack.c.l.b16 %v198
    %v844 = vunpack.c.h.b16 %v198
    %v845 = vunpack.c.l.b16 %v199
    %v846 = vunpack.c.h.b16 %v199
    %v847 = vunpack.c.l.b16 %v200
    %v848 = vunpack.c.h.b16 %v200
    %v849 = vunpack.c.l.b16 %v201
    %v850 = vunpack.c.h.b16 %v201
    %v851 = vunpack.c.l.b16 %v202
    %v852 = vunpack.c.h.b16 %v202
    %v853 = vunpack.c.l.b16 %v203
    %v854 = vunpack.c.h.b16 %v203
    %v855 = vunpack.c.l.b16 %v204
    %v856 = vunpack.c.h.b16 %v204
    %v857 = vunpack.c.l.b16 %v205
    %v858 = vunpack.c.h.b16 %v205
    %v859 = vunpack.c.l.b16 %v206
    %v860 = vunpack.c.h.b16 %v206
    %v861 = vunpack.c.l.b16 %v207
    %v862 = vunpack.c.h.b16 %v207
    %v863 = vunpack.c.l.b16 %v208
    %v864 = vunpack.c.h.b16 %v208
    %v865 = vunpack.c.l.b16 %v209
    %v866 = vunpack.c.h.b16 %v209
    %v867 = vunpack.c.l.b16 %v210
    %v868 = vunpack.c.h.b16 %v210
    %v869 = vunpack.c.l.b16 %v211
    %v870 = vunpack.c.h.b16 %v211
    %v871 = vunpack.c.l.b16 %v212
    %v872 = vunpack.c.h.b16 %v212
    %v873 = vunpack.c.l.b16 %v213
    %v874 = vunpack.c.h.b16 %v213
    %v875 = vunpack.c.l.b16 %v214
    %v876 = vunpack.c.h.b16 %v214
    %v877 = vunpack.c.l.b16 %v215
    %v878 = vunpack.c.h.b16 %v215
    %v879 = vunpack.c.l.b16 %v216
    %v880 = vunpack.c.h.b16 %v216
    %v881 = vunpack.c.l.b16 %v217
    %v882 = vunpack.c.h.b16 %v217
    %v883 = vunpack.c.l.b16 %v218
    %v884 = vunpack.c.h.b16 %v218
    %v885 = vunpack.c.l.b16 %v219
    %v886 = vunpack.c.h.b16 %v219
    %v887 = vunpack.c.l.b16 %v220
    %v888 = vunpack.c.h.b16 %v220
    %v889 = vunpack.c.l.b16 %v221
    %v890 = vunpack.c.h.b16 %v221
    %v891 = vunpack.c.l.b16 %v222
    %v892 = vunpack.c.h.b16 %v222
    %v893 = vunpack.c.l.b16 %v223
    %v894 = vunpack.c.h.b16 %v223
    %v895 = vunpack.c.l.b16 %v224
    %v896 = vunpack.c.h.b16 %v224
    %v897 = vunpack.c.l.b16 %v225
    %v898 = vunpack.c.h.b16 %v225
    %v899 = vunpack.c.l.b16 %v226
    %v900 = vunpack.c.h.b16 %v226
    %v901 = vunpack.c.l.b16 %v227
    %v902 = vunpack.c.h.b16 %v227
    %v903 = vunpack.c.l.b16 %v228
    %v904 = vunpack.c.h.b16 %v228
    %v905 = vunpack.c.l.b16 %v229
    %v906 = vunpack.c.h.b16 %v229
    %v907 = vunpack.c.l.b16 %v230
    %v908 = vunpack.c.h.b16 %v230
    %v909 = vunpack.c.l.b16 %v231
    %v910 = vunpack.c.h.b16 %v231
    %v911 = vunpack.c.l.b16 %v232
    %v912 = vunpack.c.h.b16 %v232
    %v913 = vunpack.c.l.b16 %v233
    %v914 = vunpack.c.h.b16 %v233
    %v915 = vunpack.c.l.b16 %v234
    %v916 = vunpack.c.h.b16 %v234
    %v917 = vunpack.c.l.b16 %v235
    %v918 = vunpack.c.h.b16 %v235
    %v919 = vunpack.c.l.b16 %v236
    %v920 = vunpack.c.h.b16 %v236
    %v921 = vunpack.c.l.b16 %v237
    %v922 = vunpack.c.h.b16 %v237
    %v923 = vunpack.c.l.b16 %v238
    %v924 = vunpack.c.h.b16 %v238
    %v925 = vunpack.c.l.b16 %v239
    %v926 = vunpack.c.h.b16 %v239
    %v927 = vunpack.c.l.b16 %v240
    %v928 = vunpack.c.h.b16 %v240
    %v929 = vunpack.c.l.b16 %v241
    %v930 = vunpack.c.h.b16 %v241
    %v931 = vunpack.c.l.b16 %v242
    %v932 = vunpack.c.h.b16 %v242
    %v933 = vunpack.c.l.b16 %v243
    %v934 = vunpack.c.h.b16 %v243
    %v935 = vunpack.c.l.b16 %v244
    %v936 = vunpack.c.h.b16 %v244
    %v937 = vunpack.c.l.b16 %v245
    %v938 = vunpack.c.h.b16 %v245
    %v939 = vunpack.c.l.b16 %v246
    %v940 = vunpack.c.h.b16 %v246
    %v941 = vunpack.c.l.b16 %v247
    %v942 = vunpack.c.h.b16 %v247
    %v943 = vunpack.c.l.b16 %v248
    %v944 = vunpack.c.h.b16 %v248
    %v945 = vunpack.c.l.b16 %v249
    %v946 = vunpack.c.h.b16 %v249
    %v947 = vunpack.c.l.b16 %v250
    %v948 = vunpack.c.h.b16 %v250
    %v949 = vunpack.c.l.b16 %v251
    %v950 = vunpack.c.h.b16 %v251
    %v951 = vunpack.c.l.b16 %v252
    %v952 = vunpack.c.h.b16 %v252
    %v953 = vunpack.c.l.b16 %v253
    %v954 = vunpack.c.h.b16 %v253
    %v955 = vunpack.c.l.b16 %v254
    %v956 = vunpack.c.h.b16 %v254
    %v957 = vunpack.c.l.b16 %v255
    %v958 = vunpack.c.h.b16 %v255
    %v959 = vunpack.c.l.b16 %v256
    %v960 = vunpack.c.h.b16 %v256
    %v961 = vunpack.c.l.b16 %v257
    %v962 = vunpack.c.h.b16 %v257
    %v963 = vunpack.c.l.b16 %v258
    %v964 = vunpack.c.h.b16 %v258
    %v965 = vunpack.c.l.b16 %v259
    %v966 = vunpack.c.h.b16 %v259
    %v967 = vunpack.c.l.b16 %v260
    %v968 = vunpack.c.h.b16 %v260
    %v969 = vunpack.c.l.b16 %v261
    %v970 = vunpack.c.h.b16 %v261
    %v971 = vunpack.c.l.b16 %v262
    %v972 = vunpack.c.h.b16 %v262
    %v973 = vunpack.c.l.b16 %v263
    %v974 = vunpack.c.h.b16 %v263
    %v975 = vunpack.c.l.b16 %v264
    %v976 = vunpack.c.h.b16 %v264
    %v977 = vunpack.c.l.b16 %v265
    %v978 = vunpack.c.h.b16 %v265
    %v979 = vunpack.c.l.b16 %v266
    %v980 = vunpack.c.h.b16 %v266
    %v981 = vunpack.c.l.b16 %v267
    %v982 = vunpack.c.h.b16 %v267
    %v983 = vunpack.c.l.b16 %v268
    %v984 = vunpack.c.h.b16 %v268
    %v985 = vunpack.c.l.b16 %v269
    %v986 = vunpack.c.h.b16 %v269
    %v987 = vunpack.c.l.b16 %v270
    %v988 = vunpack.c.h.b16 %v270
    %v989 = vunpack.c.l.b16 %v271
    %v990 = vunpack.c.h.b16 %v271
    %v991 = vunpack.c.l.b16 %v272
    %v992 = vunpack.c.h.b16 %v272
    %v993 = vunpack.c.l.b16 %v273
    %v994 = vunpack.c.h.b16 %v273
    %v995 = vunpack.c.l.b16 %v274
    %v996 = vunpack.c.h.b16 %v274
    %v997 = vunpack.c.l.b16 %v275
    %v998 = vunpack.c.h.b16 %v275
    %v999 = vunpack.c.l.b16 %v276
    %v1000 = vunpack.c.h.b16 %v276
    %v1001 = vunpack.c.l.b16 %v277
    %v1002 = vunpack.c.h.b16 %v277
    %v1003 = vunpack.c.l.b16 %v278
    %v1004 = vunpack.c.h.b16 %v278
    %v1005 = vunpack.c.l.b16 %v279
    %v1006 = vunpack.c.h.b16 %v279
    %v1007 = vunpack.c.l.b16 %v280
    %v1008 = vunpack.c.h.b16 %v280
    %v1009 = vunpack.c.l.b16 %v281
    %v1010 = vunpack.c.h.b16 %v281
    %v1011 = vunpack.c.l.b16 %v282
    %v1012 = vunpack.c.h.b16 %v282
    %v1013 = vunpack.c.l.b16 %v283
    %v1014 = vunpack.c.h.b16 %v283
    %v1015 = vunpack.c.l.b16 %v284
    %v1016 = vunpack.c.h.b16 %v284
    %v1017 = vunpack.c.l.b16 %v285
    %v1018 = vunpack.c.h.b16 %v285
    %v1019 = vunpack.c.l.b16 %v286
    %v1020 = vunpack.c.h.b16 %v286
    %v1021 = vunpack.c.l.b16 %v287
    %v1022 = vunpack.c.h.b16 %v287
    %v1023 = vunpack.c.l.b16 %v288
    %v1024 = vunpack.c.h.b16 %v288
    %v1025 = vunpack.c.l.b16 %v289
    %v1026 = vunpack.c.h.b16 %v289
    %v1027 = vunpack.c.l.b16 %v290
    %v1028 = vunpack.c.h.b16 %v290
    %v1029 = vunpack.c.l.b16 %v291
    %v1030 = vunpack.c.h.b16 %v291
    %v1031 = vunpack.c.l.b16 %v292
    %v1032 = vunpack.c.h.b16 %v292
    %v1033 = vunpack.c.l.b16 %v293
    %v1034 = vunpack.c.h.b16 %v293
    %v1035 = vunpack.c.l.b16 %v294
    %v1036 = vunpack.c.h.b16 %v294
    %v1037 = vunpack.c.l.b16 %v295
    %v1038 = vunpack.c.h.b16 %v295
    %v1039 = vunpack.c.l.b16 %v296
    %v1040 = vunpack.c.h.b16 %v296
    %v1041 = vunpack.c.l.b16 %v297
    %v1042 = vunpack.c.h.b16 %v297
    %v1043 = vunpack.c.l.b16 %v298
    %v1044 = vunpack.c.h.b16 %v298
    %v1045 = vunpack.c.l.b16 %v299
    %v1046 = vunpack.c.h.b16 %v299
    %v1047 = vunpack.c.l.b16 %v300
    %v1048 = vunpack.c.h.b16 %v300
    %v1049 = vunpack.c.l.b16 %v301
    %v1050 = vunpack.c.h.b16 %v301
    %v1051 = vunpack.c.l.b16 %v302
    %v1052 = vunpack.c.h.b16 %v302
    %v1053 = vunpack.c.l.b16 %v303
    %v1054 = vunpack.c.h.b16 %v303
    %v1055 = vunpack.c.l.b16 %v304
    %v1056 = vunpack.c.h.b16 %v304
    %v1057 = vunpack.c.l.b16 %v305
    %v1058 = vunpack.c.h.b16 %v305
    %v1059 = vunpack.c.l.b16 %v306
    %v1060 = vunpack.c.h.b16 %v306
    %v1061 = vunpack.c.l.b16 %v307
    %v1062 = vunpack.c.h.b16 %v307
    %v1063 = vunpack.c.l.b16 %v308
    %v1064 = vunpack.c.h.b16 %v308
    %v1065 = vunpack.c.l.b16 %v309
    %v1066 = vunpack.c.h.b16 %v309
    %v1067 = vunpack.c.l.b16 %v310
    %v1068 = vunpack.c.h.b16 %v310
    %v1069 = vunpack.c.l.b16 %v311
    %v1070 = vunpack.c.h.b16 %v311
    %v1071 = vunpack.c.l.b16 %v312
    %v1072 = vunpack.c.h.b16 %v312
    %v1073 = vunpack.c.l.b16 %v313
    %v1074 = vunpack.c.h.b16 %v313
    %v1075 = vunpack.c.l.b16 %v314
    %v1076 = vunpack.c.h.b16 %v314
    %v1077 = vunpack.c.l.b16 %v315
    %v1078 = vunpack.c.h.b16 %v315
    %v1079 = vunpack.c.l.b16 %v316
    %v1080 = vunpack.c.h.b16 %v316
    %v1081 = vunpack.c.l.b16 %v317
    %v1082 = vunpack.c.h.b16 %v317
    %v1083 = vunpack.c.l.b16 %v318
    %v1084 = vunpack.c.h.b16 %v318
    %v1085 = vunpack.c.l.b16 %v319
    %v1086 = vunpack.c.h.b16 %v319
    %v1087 = vunpack.c.l.b16 %v320
    %v1088 = vunpack.c.h.b16 %v320
    %v1089 = vunpack.c.l.b16 %v321
    %v1090 = vunpack.c.h.b16 %v321
    %v1091 = vunpack.c.l.b16 %v322
    %v1092 = vunpack.c.h.b16 %v322
    %v1093 = vunpack.c.l.b16 %v323
    %v1094 = vunpack.c.h.b16 %v323
    %v1095 = vunpack.c.l.b16 %v324
    %v1096 = vunpack.c.h.b16 %v324
    %v1097 = vunpack.c.l.b16 %v325
    %v1098 = vunpack.c.h.b16 %v325
    %v1099 = vunpack.c.l.b16 %v326
    %v1100 = vunpack.c.h.b16 %v326
    %v1101 = vunpack.c.l.b16 %v327
    %v1102 = vunpack.c.h.b16 %v327
    %v1103 = vunpack.c.l.b16 %v328
    %v1104 = vunpack.c.h.b16 %v328
    %v1105 = vunpack.c.l.b16 %v329
    %v1106 = vunpack.c.h.b16 %v329
    %v1107 = vunpack.c.l.b16 %v330
    %v1108 = vunpack.c.h.b16 %v330
    %v1109 = vunpack.c.l.b16 %v331
    %v1110 = vunpack.c.h.b16 %v331
    %v1111 = vunpack.c.l.b16 %v332
    %v1112 = vunpack.c.h.b16 %v332
    %v1113 = vunpack.c.l.b16 %v333
    %v1114 = vunpack.c.h.b16 %v333
    %v1115 = vunpack.c.l.b16 %v334
    %v1116 = vunpack.c.h.b16 %v334
    %v1117 = vunpack.c.l.b16 %v335
    %v1118 = vunpack.c.h.b16 %v335
    %v1119 = vunpack.c.l.b16 %v336
    %v1120 = vunpack.c.h.b16 %v336
    %v1121 = vunpack.c.l.b16 %v337
    %v1122 = vunpack.c.h.b16 %v337
    %v1123 = vunpack.c.l.b16 %v338
    %v1124 = vunpack.c.h.b16 %v338
    %v1125 = vunpack.c.l.b16 %v339
    %v1126 = vunpack.c.h.b16 %v339
    %v1127 = vunpack.c.l.b16 %v340
    %v1128 = vunpack.c.h.b16 %v340
    %v1129 = vunpack.c.l.b16 %v341
    %v1130 = vunpack.c.h.b16 %v341
    %v1131 = vunpack.c.l.b16 %v342
    %v1132 = vunpack.c.h.b16 %v342
    %v1133 = vpack.c.b16 %v625, %v621
    %v1134 = vpack.c.b16 %v626, %v622
    %v1135 = vpack.c.b16 %v627, %v623
    %v1136 = vpack.c.b16 %v628, %v624
    %v1137 = vpack.c.b16 %v633, %v629
    %v1138 = vpack.c.b16 %v634, %v630
    %v1139 = vpack.c.b16 %v635, %v631
    %v1140 = vpack.c.b16 %v636, %v632
    %v1141 = vpack.c.b16 %v641, %v637
    %v1142 = vpack.c.b16 %v642, %v638
    %v1143 = vpack.c.b16 %v643, %v639
    %v1144 = vpack.c.b16 %v644, %v640
    %v1145 = vpack.c.b16 %v649, %v645
    %v1146 = vpack.c.b16 %v650, %v646
    %v1147 = vpack.c.b16 %v651, %v647
    %v1148 = vpack.c.b16 %v652, %v648
    %v1149 = vpack.c.b16 %v657, %v653
    %v1150 = vpack.c.b16 %v658, %v654
    %v1151 = vpack.c.b16 %v659, %v655
    %v1152 = vpack.c.b16 %v660, %v656
    %v1153 = vpack.c.b16 %v665, %v661
    %v1154 = vpack.c.b16 %v666, %v662
    %v1155 = vpack.c.b16 %v667, %v663
    %v1156 = vpack.c.b16 %v668, %v664
    %v1157 = vpack.c.b16 %v673, %v669
    %v1158 = vpack.c.b16 %v674, %v670
    %v1159 = vpack.c.b16 %v675, %v671
    %v1160 = vpack.c.b16 %v676, %v672
    %v1161 = vpack.c.b16 %v681, %v677
    %v1162 = vpack.c.b16 %v682, %v678
    %v1163 = vpack.c.b16 %v683, %v679
    %v1164 = vpack.c.b16 %v684, %v680
    %v1165 = vpack.c.b16 %v689, %v685
    %v1166 = vpack.c.b16 %v690, %v686
    %v1167 = vpack.c.b16 %v691, %v687
    %v1168 = vpack.c.b16 %v692, %v688
    %v1169 = vpack.c.b16 %v697, %v693
    %v1170 = vpack.c.b16 %v698, %v694
    %v1171 = vpack.c.b16 %v699, %v695
    %v1172 = vpack.c.b16 %v700, %v696
    %v1173 = vpack.c.b16 %v705, %v701
    %v1174 = vpack.c.b16 %v706, %v702
    %v1175 = vpack.c.b16 %v707, %v703
    %v1176 = vpack.c.b16 %v708, %v704
    %v1177 = vpack.c.b16 %v713, %v709
    %v1178 = vpack.c.b16 %v714, %v710
    %v1179 = vpack.c.b16 %v715, %v711
    %v1180 = vpack.c.b16 %v716, %v712
    %v1181 = vpack.c.b16 %v721, %v717
    %v1182 = vpack.c.b16 %v722, %v718
    %v1183 = vpack.c.b16 %v723, %v719
    %v1184 = vpack.c.b16 %v724, %v720
    %v1185 = vpack.c.b16 %v729, %v725
    %v1186 = vpack.c.b16 %v730, %v726
    %v1187 = vpack.c.b16 %v731, %v727
    %v1188 = vpack.c.b16 %v732, %v728
    %v1189 = vpack.c.b16 %v737, %v733
    %v1190 = vpack.c.b16 %v738, %v734
    %v1191 = vpack.c.b16 %v739, %v735
    %v1192 = vpack.c.b16 %v740, %v736
    %v1193 = vpack.c.b16 %v745, %v741
    %v1194 = vpack.c.b16 %v746, %v742
    %v1195 = vpack.c.b16 %v747, %v743
    %v1196 = vpack.c.b16 %v748, %v744
    %v1197 = vpack.c.b16 %v753, %v749
    %v1198 = vpack.c.b16 %v754, %v750
    %v1199 = vpack.c.b16 %v755, %v751
    %v1200 = vpack.c.b16 %v756, %v752
    %v1201 = vpack.c.b16 %v761, %v757
    %v1202 = vpack.c.b16 %v762, %v758
    %v1203 = vpack.c.b16 %v763, %v759
    %v1204 = vpack.c.b16 %v764, %v760
    %v1205 = vpack.c.b16 %v769, %v765
    %v1206 = vpack.c.b16 %v770, %v766
    %v1207 = vpack.c.b16 %v771, %v767
    %v1208 = vpack.c.b16 %v772, %v768
    %v1209 = vpack.c.b16 %v777, %v773
    %v1210 = vpack.c.b16 %v778, %v774
    %v1211 = vpack.c.b16 %v779, %v775
    %v1212 = vpack.c.b16 %v780, %v776
    %v1213 = vpack.c.b16 %v785, %v781
    %v1214 = vpack.c.b16 %v786, %v782
    %v1215 = vpack.c.b16 %v787, %v783
    %v1216 = vpack.c.b16 %v788, %v784
    %v1217 = vpack.c.b16 %v793, %v789
    %v1218 = vpack.c.b16 %v794, %v790
    %v1219 = vpack.c.b16 %v795, %v791
    %v1220 = vpack.c.b16 %v796, %v792
    %v1221 = vpack.c.b16 %v801, %v797
    %v1222 = vpack.c.b16 %v802, %v798
    %v1223 = vpack.c.b16 %v803, %v799
    %v1224 = vpack.c.b16 %v804, %v800
    %v1225 = vpack.c.b16 %v809, %v805
    %v1226 = vpack.c.b16 %v810, %v806
    %v1227 = vpack.c.b16 %v811, %v807
    %v1228 = vpack.c.b16 %v812, %v808
    %v1229 = vpack.c.b16 %v817, %v813
    %v1230 = vpack.c.b16 %v818, %v814
    %v1231 = vpack.c.b16 %v819, %v815
    %v1232 = vpack.c.b16 %v820, %v816
    %v1233 = vpack.c.b16 %v825, %v821
    %v1234 = vpack.c.b16 %v826, %v822
    %v1235 = vpack.c.b16 %v827, %v823
    %v1236 = vpack.c.b16 %v828, %v824
    %v1237 = vpack.c.b16 %v833, %v829
    %v1238 = vpack.c.b16 %v834, %v830
    %v1239 = vpack.c.b16 %v835, %v831
    %v1240 = vpack.c.b16 %v836, %v832
    %v1241 = vpack.c.b16 %v841, %v837
    %v1242 = vpack.c.b16 %v842, %v838
    %v1243 = vpack.c.b16 %v843, %v839
    %v1244 = vpack.c.b16 %v844, %v840
    %v1245 = vpack.c.b16 %v849, %v845
    %v1246 = vpack.c.b16 %v850, %v846
    %v1247 = vpack.c.b16 %v851, %v847
    %v1248 = vpack.c.b16 %v852, %v848
    %v1249 = vpack.c.b16 %v857, %v853
    %v1250 = vpack.c.b16 %v858, %v854
    %v1251 = vpack.c.b16 %v859, %v855
    %v1252 = vpack.c.b16 %v860, %v856
    %v1253 = vpack.c.b16 %v865, %v861
    %v1254 = vpack.c.b16 %v866, %v862
    %v1255 = vpack.c.b16 %v867, %v863
    %v1256 = vpack.c.b16 %v868, %v864
    %v1257 = vpack.c.b16 %v873, %v869
    %v1258 = vpack.c.b16 %v874, %v870
    %v1259 = vpack.c.b16 %v875, %v871
    %v1260 = vpack.c.b16 %v876, %v872
    %v1261 = vpack.c.b16 %v881, %v877
    %v1262 = vpack.c.b16 %v882, %v878
    %v1263 = vpack.c.b16 %v883, %v879
    %v1264 = vpack.c.b16 %v884, %v880
    %v1265 = vpack.c.b16 %v889, %v885
    %v1266 = vpack.c.b16 %v890, %v886
    %v1267 = vpack.c.b16 %v891, %v887
    %v1268 = vpack.c.b16 %v892, %v888
    %v1269 = vpack.c.b16 %v897, %v893
    %v1270 = vpack.c.b16 %v898, %v894
    %v1271 = vpack.c.b16 %v899, %v895
    %v1272 = vpack.c.b16 %v900, %v896
    %v1273 = vpack.c.b16 %v905, %v901
    %v1274 = vpack.c.b16 %v906, %v902
    %v1275 = vpack.c.b16 %v907, %v903
    %v1276 = vpack.c.b16 %v908, %v904
    %v1277 = vpack.c.b16 %v913, %v909
    %v1278 = vpack.c.b16 %v914, %v910
    %v1279 = vpack.c.b16 %v915, %v911
    %v1280 = vpack.c.b16 %v916, %v912
    %v1281 = vpack.c.b16 %v921, %v917
    %v1282 = vpack.c.b16 %v922, %v918
    %v1283 = vpack.c.b16 %v923, %v919
    %v1284 = vpack.c.b16 %v924, %v920
    %v1285 = vpack.c.b16 %v929, %v925
    %v1286 = vpack.c.b16 %v930, %v926
    %v1287 = vpack.c.b16 %v931, %v927
    %v1288 = vpack.c.b16 %v932, %v928
    %v1289 = vpack.c.b16 %v937, %v933
    %v1290 = vpack.c.b16 %v938, %v934
    %v1291 = vpack.c.b16 %v939, %v935
    %v1292 = vpack.c.b16 %v940, %v936
    %v1293 = vpack.c.b16 %v945, %v941
    %v1294 = vpack.c.b16 %v946, %v942
    %v1295 = vpack.c.b16 %v947, %v943
    %v1296 = vpack.c.b16 %v948, %v944
    %v1297 = vpack.c.b16 %v953, %v949
    %v1298 = vpack.c.b16 %v954, %v950
    %v1299 = vpack.c.b16 %v955, %v951
    %v1300 = vpack.c.b16 %v956, %v952
    %v1301 = vpack.c.b16 %v961, %v957
    %v1302 = vpack.c.b16 %v962, %v958
    %v1303 = vpack.c.b16 %v963, %v959
    %v1304 = vpack.c.b16 %v964, %v960
    %v1305 = vpack.c.b16 %v969, %v965
    %v1306 = vpack.c.b16 %v970, %v966
    %v1307 = vpack.c.b16 %v971, %v967
    %v1308 = vpack.c.b16 %v972, %v968
    %v1309 = vpack.c.b16 %v977, %v973
    %v1310 = vpack.c.b16 %v978, %v974
    %v1311 = vpack.c.b16 %v979, %v975
    %v1312 = vpack.c.b16 %v980, %v976
    %v1313 = vpack.c.b16 %v985, %v981
    %v1314 = vpack.c.b16 %v986, %v982
    %v1315 = vpack.c.b16 %v987, %v983
    %v1316 = vpack.c.b16 %v988, %v984
    %v1317 = vpack.c.b16 %v993, %v989
    %v1318 = vpack.c.b16 %v994, %v990
    %v1319 = vpack.c.b16 %v995, %v991
    %v1320 = vpack.c.b16 %v996, %v992
    %v1321 = vpack.c.b16 %v1001, %v997
    %v1322 = vpack.c.b16 %v1002, %v998
    %v1323 = vpack.c.b16 %v1003, %v999
    %v1324 = vpack.c.b16 %v1004, %v1000
    %v1325 = vpack.c.b16 %v1009, %v1005
    %v1326 = vpack.c.b16 %v1010, %v1006
    %v1327 = vpack.c.b16 %v1011, %v1007
    %v1328 = vpack.c.b16 %v1012, %v1008
    %v1329 = vpack.c.b16 %v1017, %v1013
    %v1330 = vpack.c.b16 %v1018, %v1014
    %v1331 = vpack.c.b16 %v1019, %v1015
    %v1332 = vpack.c.b16 %v1020, %v1016
    %v1333 = vpack.c.b16 %v1025, %v1021
    %v1334 = vpack.c.b16 %v1026, %v1022
    %v1335 = vpack.c.b16 %v1027, %v1023
    %v1336 = vpack.c.b16 %v1028, %v1024
    %v1337 = vpack.c.b16 %v1033, %v1029
    %v1338 = vpack.c.b16 %v1034, %v1030
    %v1339 = vpack.c.b16 %v1035, %v1031
    %v1340 = vpack.c.b16 %v1036, %v1032
    %v1341 = vpack.c.b16 %v1041, %v1037
    %v1342 = vpack.c.b16 %v1042, %v1038
    %v1343 = vpack.c.b16 %v1043, %v1039
    %v1344 = vpack.c.b16 %v1044, %v1040
    %v1345 = vpack.c.b16 %v1049, %v1045
    %v1346 = vpack.c.b16 %v1050, %v1046
    %v1347 = vpack.c.b16 %v1051, %v1047
    %v1348 = vpack.c.b16 %v1052, %v1048
    %v1349 = vpack.c.b16 %v1057, %v1053
    %v1350 = vpack.c.b16 %v1058, %v1054
    %v1351 = vpack.c.b16 %v1059, %v1055
    %v1352 = vpack.c.b16 %v1060, %v1056
    %v1353 = vpack.c.b16 %v1065, %v1061
    %v1354 = vpack.c.b16 %v1066, %v1062
    %v1355 = vpack.c.b16 %v1067, %v1063
    %v1356 = vpack.c.b16 %v1068, %v1064
    %v1357 = vpack.c.b16 %v1073, %v1069
    %v1358 = vpack.c.b16 %v1074, %v1070
    %v1359 = vpack.c.b16 %v1075, %v1071
    %v1360 = vpack.c.b16 %v1076, %v1072
    %v1361 = vpack.c.b16 %v1081, %v1077
    %v1362 = vpack.c.b16 %v1082, %v1078
    %v1363 = vpack.c.b16 %v1083, %v1079
    %v1364 = vpack.c.b16 %v1084, %v1080
    %v1365 = vpack.c.b16 %v1089, %v1085
    %v1366 = vpack.c.b16 %v1090, %v1086
    %v1367 = vpack.c.b16 %v1091, %v1087
    %v1368 = vpack.c.b16 %v1092, %v1088
    %v1369 = vpack.c.b16 %v1097, %v1093
    %v1370 = vpack.c.b16 %v1098, %v1094
    %v1371 = vpack.c.b16 %v1099, %v1095
    %v1372 = vpack.c.b16 %v1100, %v1096
    %v1373 = vpack.c.b16 %v1105, %v1101
    %v1374 = vpack.c.b16 %v1106, %v1102
    %v1375 = vpack.c.b16 %v1107, %v1103
    %v1376 = vpack.c.b16 %v1108, %v1104
    %v1377 = vpack.c.b16 %v1113, %v1109
    %v1378 = vpack.c.b16 %v1114, %v1110
    %v1379 = vpack.c.b16 %v1115, %v1111
    %v1380 = vpack.c.b16 %v1116, %v1112
    %v1381 = vpack.c.b16 %v1121, %v1117
    %v1382 = vpack.c.b16 %v1122, %v1118
    %v1383 = vpack.c.b16 %v1123, %v1119
    %v1384 = vpack.c.b16 %v1124, %v1120
    %v1385 = vpack.c.b16 %v1129, %v1125
    %v1386 = vpack.c.b16 %v1130, %v1126
    %v1387 = vpack.c.b16 %v1131, %v1127
    %v1388 = vpack.c.b16 %v1132, %v1128
    %1645 = vmatprep.subr.bf16.mxu0 %v1134
    %1646 = vmatpush1.bf16.msra.mxu0 %v1133
    %1647 = vmatprep.subr.bf16.mxu0 %v1138
    %1648 = vmatpush1.bf16.msra.mxu0 %v1137
    %1649 = vmatprep.subr.bf16.mxu0 %v1142
    %1650 = vmatpush1.bf16.msra.mxu0 %v1141
    %1651 = vmatprep.subr.bf16.mxu0 %v1146
    %1652 = vmatpush1.bf16.msra.mxu0 %v1145
    %1653 = vmatprep.subr.bf16.mxu0 %v1150
    %1654 = vmatpush1.bf16.msra.mxu0 %v1149
    %1655 = vmatprep.subr.bf16.mxu0 %v1154
    %1656 = vmatpush1.bf16.msra.mxu0 %v1153
    %1657 = vmatprep.subr.bf16.mxu0 %v1158
    %1658 = vmatpush1.bf16.msra.mxu0 %v1157
    %1659 = vmatprep.subr.bf16.mxu0 %v1162
    %1660 = vmatpush1.bf16.msra.mxu0 %v1161
    %1661 = vmatprep.subr.bf16.mxu0 %v1166
    %1662 = vmatpush1.bf16.msra.mxu0 %v1165
    %1663 = vmatprep.subr.bf16.mxu0 %v1170
    %1664 = vmatpush1.bf16.msra.mxu0 %v1169
    %1665 = vmatprep.subr.bf16.mxu0 %v1174
    %1666 = vmatpush1.bf16.msra.mxu0 %v1173
    %1667 = vmatprep.subr.bf16.mxu0 %v1178
    %1668 = vmatpush1.bf16.msra.mxu0 %v1177
    %1669 = vmatprep.subr.bf16.mxu0 %v1182
    %1670 = vmatpush1.bf16.msra.mxu0 %v1181
    %1671 = vmatprep.subr.bf16.mxu0 %v1186
    %1672 = vmatpush1.bf16.msra.mxu0 %v1185
    %1673 = vmatprep.subr.bf16.mxu0 %v1190
    %1674 = vmatpush1.bf16.msra.mxu0 %v1189
    %1675 = vmatprep.subr.bf16.mxu0 %v1194
    %1676 = vmatpush1.bf16.msra.mxu0 %v1193
    %1677 = vmatprep.mubr.bf16.mxu0 %v80
    %1678 = vmatmul.mubr.bf16.gmra.mrb[0].mxu0 %v79
    %v1679 = vpop.f32.mrb[0].mxu0
    %v1680 = vadd.f32 %v348, %v1679
    %v1681 = vpop.f32.mrb[0].mxu0
    %v1682 = vadd.f32 %v352, %v1681
    %v1683 = vpop.f32.mrb[0].mxu0
    %v1684 = vadd.f32 %v348, %v1683
    %v1685 = vpop.f32.mrb[0].mxu0
    %v1686 = vadd.f32 %v352, %v1685
    %1687 = vdwg.mxu0
    %1688 = vmatprep.subr.bf16.mxu0 %v1198
    %1689 = vmatpush1.bf16.msra.mxu0 %v1197
    %1690 = vmatprep.subr.bf16.mxu0 %v1202
    %1691 = vmatpush1.bf16.msra.mxu0 %v1201
    %1692 = vmatprep.subr.bf16.mxu0 %v1206
    %1693 = vmatpush1.bf16.msra.mxu0 %v1205
    %1694 = vmatprep.subr.bf16.mxu0 %v1210
    %1695 = vmatpush1.bf16.msra.mxu0 %v1209
    %1696 = vmatprep.subr.bf16.mxu0 %v1214
    %1697 = vmatpush1.bf16.msra.mxu0 %v1213
    %1698 = vmatprep.subr.bf16.mxu0 %v1218
    %1699 = vmatpush1.bf16.msra.mxu0 %v1217
    %1700 = vmatprep.subr.bf16.mxu0 %v1222
    %1701 = vmatpush1.bf16.msra.mxu0 %v1221
    %1702 = vmatprep.subr.bf16.mxu0 %v1226
    %1703 = vmatpush1.bf16.msra.mxu0 %v1225
    %1704 = vmatprep.subr.bf16.mxu0 %v1230
    %1705 = vmatpush1.bf16.msra.mxu0 %v1229
    %1706 = vmatprep.subr.bf16.mxu0 %v1234
    %1707 = vmatpush1.bf16.msra.mxu0 %v1233
    %1708 = vmatprep.subr.bf16.mxu0 %v1238
    %1709 = vmatpush1.bf16.msra.mxu0 %v1237
    %1710 = vmatprep.subr.bf16.mxu0 %v1242
    %1711 = vmatpush1.bf16.msra.mxu0 %v1241
    %1712 = vmatprep.subr.bf16.mxu0 %v1246
    %1713 = vmatpush1.bf16.msra.mxu0 %v1245
    %1714 = vmatprep.subr.bf16.mxu0 %v1250
    %1715 = vmatpush1.bf16.msra.mxu0 %v1249
    %1716 = vmatprep.subr.bf16.mxu0 %v1254
    %1717 = vmatpush1.bf16.msra.mxu0 %v1253
    %1718 = vmatprep.subr.bf16.mxu0 %v1258
    %1719 = vmatpush1.bf16.msra.mxu0 %v1257
    %1720 = vmatprep.mubr.bf16.mxu0 %v82
    %1721 = vmatmul.mubr.bf16.gmra.mrb[0].mxu0 %v81
    %v1722 = vpop.f32.mrb[0].mxu0
    %v1723 = vadd.f32 %v1680, %v1722
    %v1724 = vpop.f32.mrb[0].mxu0
    %v1725 = vadd.f32 %v1682, %v1724
    %v1726 = vpop.f32.mrb[0].mxu0
    %v1727 = vadd.f32 %v1684, %v1726
    %v1728 = vpop.f32.mrb[0].mxu0
    %v1729 = vadd.f32 %v1686, %v1728
    %1730 = vdwg.mxu0
    %1731 = vmatprep.subr.bf16.mxu0 %v1262
    %1732 = vmatpush1.bf16.msra.mxu0 %v1261
    %1733 = vmatprep.subr.bf16.mxu0 %v1266
    %1734 = vmatpush1.bf16.msra.mxu0 %v1265
    %1735 = vmatprep.subr.bf16.mxu0 %v1270
    %1736 = vmatpush1.bf16.msra.mxu0 %v1269
    %1737 = vmatprep.subr.bf16.mxu0 %v1274
    %1738 = vmatpush1.bf16.msra.mxu0 %v1273
    %1739 = vmatprep.subr.bf16.mxu0 %v1278
    %1740 = vmatpush1.bf16.msra.mxu0 %v1277
    %1741 = vmatprep.subr.bf16.mxu0 %v1282
    %1742 = vmatpush1.bf16.msra.mxu0 %v1281
    %1743 = vmatprep.subr.bf16.mxu0 %v1286
    %1744 = vmatpush1.bf16.msra.mxu0 %v1285
    %1745 = vmatprep.subr.bf16.mxu0 %v1290
    %1746 = vmatpush1.bf16.msra.mxu0 %v1289
    %1747 = vmatprep.subr.bf16.mxu0 %v1294
    %1748 = vmatpush1.bf16.msra.mxu0 %v1293
    %1749 = vmatprep.subr.bf16.mxu0 %v1298
    %1750 = vmatpush1.bf16.msra.mxu0 %v1297
    %1751 = vmatprep.subr.bf16.mxu0 %v1302
    %1752 = vmatpush1.bf16.msra.mxu0 %v1301
    %1753 = vmatprep.subr.bf16.mxu0 %v1306
    %1754 = vmatpush1.bf16.msra.mxu0 %v1305
    %1755 = vmatprep.subr.bf16.mxu0 %v1310
    %1756 = vmatpush1.bf16.msra.mxu0 %v1309
    %1757 = vmatprep.subr.bf16.mxu0 %v1314
    %1758 = vmatpush1.bf16.msra.mxu0 %v1313
    %1759 = vmatprep.subr.bf16.mxu0 %v1318
    %1760 = vmatpush1.bf16.msra.mxu0 %v1317
    %1761 = vmatprep.subr.bf16.mxu0 %v1322
    %1762 = vmatpush1.bf16.msra.mxu0 %v1321
    %1763 = vmatprep.mubr.bf16.mxu0 %v84
    %1764 = vmatmul.mubr.bf16.gmra.mrb[0].mxu0 %v83
    %v1765 = vpop.f32.mrb[0].mxu0
    %v1766 = vadd.f32 %v1723, %v1765
    %v1767 = vpop.f32.mrb[0].mxu0
    %v1768 = vadd.f32 %v1725, %v1767
    %v1769 = vpop.f32.mrb[0].mxu0
    %v1770 = vadd.f32 %v1727, %v1769
    %v1771 = vpop.f32.mrb[0].mxu0
    %v1772 = vadd.f32 %v1729, %v1771
    %1773 = vdwg.mxu0
    %1774 = vmatprep.subr.bf16.mxu0 %v1326
    %1775 = vmatpush1.bf16.msra.mxu0 %v1325
    %1776 = vmatprep.subr.bf16.mxu0 %v1330
    %1777 = vmatpush1.bf16.msra.mxu0 %v1329
    %1778 = vmatprep.subr.bf16.mxu0 %v1334
    %1779 = vmatpush1.bf16.msra.mxu0 %v1333
    %1780 = vmatprep.subr.bf16.mxu0 %v1338
    %1781 = vmatpush1.bf16.msra.mxu0 %v1337
    %1782 = vmatprep.subr.bf16.mxu0 %v1342
    %1783 = vmatpush1.bf16.msra.mxu0 %v1341
    %1784 = vmatprep.subr.bf16.mxu0 %v1346
    %1785 = vmatpush1.bf16.msra.mxu0 %v1345
    %1786 = vmatprep.subr.bf16.mxu0 %v1350
    %1787 = vmatpush1.bf16.msra.mxu0 %v1349
    %1788 = vmatprep.subr.bf16.mxu0 %v1354
    %1789 = vmatpush1.bf16.msra.mxu0 %v1353
    %1790 = vmatprep.subr.bf16.mxu0 %v1358
    %1791 = vmatpush1.bf16.msra.mxu0 %v1357
    %1792 = vmatprep.subr.bf16.mxu0 %v1362
    %1793 = vmatpush1.bf16.msra.mxu0 %v1361
    %1794 = vmatprep.subr.bf16.mxu0 %v1366
    %1795 = vmatpush1.bf16.msra.mxu0 %v1365
    %1796 = vmatprep.subr.bf16.mxu0 %v1370
    %1797 = vmatpush1.bf16.msra.mxu0 %v1369
    %1798 = vmatprep.subr.bf16.mxu0 %v1374
    %1799 = vmatpush1.bf16.msra.mxu0 %v1373
    %1800 = vmatprep.subr.bf16.mxu0 %v1378
    %1801 = vmatpush1.bf16.msra.mxu0 %v1377
    %1802 = vmatprep.subr.bf16.mxu0 %v1382
    %1803 = vmatpush1.bf16.msra.mxu0 %v1381
    %1804 = vmatprep.subr.bf16.mxu0 %v1386
    %1805 = vmatpush1.bf16.msra.mxu0 %v1385
    %1806 = vmatprep.mubr.bf16.mxu0 %v86
    %1807 = vmatmul.mubr.bf16.gmra.mrb[0].mxu0 %v85
    %v1808 = vpop.f32.mrb[0].mxu0
    %v1809 = vadd.f32 %v1766, %v1808
    %v1810 = vpop.f32.mrb[0].mxu0
    %v1811 = vadd.f32 %v1768, %v1810
    %v1812 = vpop.f32.mrb[0].mxu0
    %v1813 = vadd.f32 %v1770, %v1812
    %v1814 = vpop.f32.mrb[0].mxu0
    %v1815 = vadd.f32 %v1772, %v1814
    %1816 = vdwg.mxu0
    %1817 = vmatprep.subr.bf16.mxu0 %v1136
    %1818 = vmatpush1.bf16.msra.mxu0 %v1135
    %1819 = vmatprep.subr.bf16.mxu0 %v1140
    %1820 = vmatpush1.bf16.msra.mxu0 %v1139
    %1821 = vmatprep.subr.bf16.mxu0 %v1144
    %1822 = vmatpush1.bf16.msra.mxu0 %v1143
    %1823 = vmatprep.subr.bf16.mxu0 %v1148
    %1824 = vmatpush1.bf16.msra.mxu0 %v1147
    %1825 = vmatprep.subr.bf16.mxu0 %v1152
    %1826 = vmatpush1.bf16.msra.mxu0 %v1151
    %1827 = vmatprep.subr.bf16.mxu0 %v1156
    %1828 = vmatpush1.bf16.msra.mxu0 %v1155
    %1829 = vmatprep.subr.bf16.mxu0 %v1160
    %1830 = vmatpush1.bf16.msra.mxu0 %v1159
    %1831 = vmatprep.subr.bf16.mxu0 %v1164
    %1832 = vmatpush1.bf16.msra.mxu0 %v1163
    %1833 = vmatprep.subr.bf16.mxu0 %v1168
    %1834 = vmatpush1.bf16.msra.mxu0 %v1167
    %1835 = vmatprep.subr.bf16.mxu0 %v1172
    %1836 = vmatpush1.bf16.msra.mxu0 %v1171
    %1837 = vmatprep.subr.bf16.mxu0 %v1176
    %1838 = vmatpush1.bf16.msra.mxu0 %v1175
    %1839 = vmatprep.subr.bf16.mxu0 %v1180
    %1840 = vmatpush1.bf16.msra.mxu0 %v1179
    %1841 = vmatprep.subr.bf16.mxu0 %v1184
    %1842 = vmatpush1.bf16.msra.mxu0 %v1183
    %1843 = vmatprep.subr.bf16.mxu0 %v1188
    %1844 = vmatpush1.bf16.msra.mxu0 %v1187
    %1845 = vmatprep.subr.bf16.mxu0 %v1192
    %1846 = vmatpush1.bf16.msra.mxu0 %v1191
    %1847 = vmatprep.subr.bf16.mxu0 %v1196
    %1848 = vmatpush1.bf16.msra.mxu0 %v1195
    %1849 = vmatprep.mubr.bf16.mxu0 %v80
    %1850 = vmatmul.mubr.bf16.gmra.mrb[0].mxu0 %v79
    %v1851 = vpop.f32.mrb[0].mxu0
    %v1852 = vadd.f32 %v356, %v1851
    %v1853 = vpop.f32.mrb[0].mxu0
    %v1854 = vadd.f32 %v360, %v1853
    %v1855 = vpop.f32.mrb[0].mxu0
    %v1856 = vadd.f32 %v356, %v1855
    %v1857 = vpop.f32.mrb[0].mxu0
    %v1858 = vadd.f32 %v360, %v1857
    %1859 = vdwg.mxu0
    %1860 = vmatprep.subr.bf16.mxu0 %v1200
    %1861 = vmatpush1.bf16.msra.mxu0 %v1199
    %1862 = vmatprep.subr.bf16.mxu0 %v1204
    %1863 = vmatpush1.bf16.msra.mxu0 %v1203
    %1864 = vmatprep.subr.bf16.mxu0 %v1208
    %1865 = vmatpush1.bf16.msra.mxu0 %v1207
    %1866 = vmatprep.subr.bf16.mxu0 %v1212
    %1867 = vmatpush1.bf16.msra.mxu0 %v1211
    %1868 = vmatprep.subr.bf16.mxu0 %v1216
    %1869 = vmatpush1.bf16.msra.mxu0 %v1215
    %1870 = vmatprep.subr.bf16.mxu0 %v1220
    %1871 = vmatpush1.bf16.msra.mxu0 %v1219
    %1872 = vmatprep.subr.bf16.mxu0 %v1224
    %1873 = vmatpush1.bf16.msra.mxu0 %v1223
    %1874 = vmatprep.subr.bf16.mxu0 %v1228
    %1875 = vmatpush1.bf16.msra.mxu0 %v1227
    %1876 = vmatprep.subr.bf16.mxu0 %v1232
    %1877 = vmatpush1.bf16.msra.mxu0 %v1231
    %1878 = vmatprep.subr.bf16.mxu0 %v1236
    %1879 = vmatpush1.bf16.msra.mxu0 %v1235
    %1880 = vmatprep.subr.bf16.mxu0 %v1240
    %1881 = vmatpush1.bf16.msra.mxu0 %v1239
    %1882 = vmatprep.subr.bf16.mxu0 %v1244
    %1883 = vmatpush1.bf16.msra.mxu0 %v1243
    %1884 = vmatprep.subr.bf16.mxu0 %v1248
    %1885 = vmatpush1.bf16.msra.mxu0 %v1247
    %1886 = vmatprep.subr.bf16.mxu0 %v1252
    %1887 = vmatpush1.bf16.msra.mxu0 %v1251
    %1888 = vmatprep.subr.bf16.mxu0 %v1256
    %1889 = vmatpush1.bf16.msra.mxu0 %v1255
    %1890 = vmatprep.subr.bf16.mxu0 %v1260
    %1891 = vmatpush1.bf16.msra.mxu0 %v1259
    %1892 = vmatprep.mubr.bf16.mxu0 %v82
    %1893 = vmatmul.mubr.bf16.gmra.mrb[0].mxu0 %v81
    %v1894 = vpop.f32.mrb[0].mxu0
    %v1895 = vadd.f32 %v1852, %v1894
    %v1896 = vpop.f32.mrb[0].mxu0
    %v1897 = vadd.f32 %v1854, %v1896
    %v1898 = vpop.f32.mrb[0].mxu0
    %v1899 = vadd.f32 %v1856, %v1898
    %v1900 = vpop.f32.mrb[0].mxu0
    %v1901 = vadd.f32 %v1858, %v1900
    %1902 = vdwg.mxu0
    %1903 = vmatprep.subr.bf16.mxu0 %v1264
    %1904 = vmatpush1.bf16.msra.mxu0 %v1263
    %1905 = vmatprep.subr.bf16.mxu0 %v1268
    %1906 = vmatpush1.bf16.msra.mxu0 %v1267
    %1907 = vmatprep.subr.bf16.mxu0 %v1272
    %1908 = vmatpush1.bf16.msra.mxu0 %v1271
    %1909 = vmatprep.subr.bf16.mxu0 %v1276
    %1910 = vmatpush1.bf16.msra.mxu0 %v1275
    %1911 = vmatprep.subr.bf16.mxu0 %v1280
    %1912 = vmatpush1.bf16.msra.mxu0 %v1279
    %1913 = vmatprep.subr.bf16.mxu0 %v1284
    %1914 = vmatpush1.bf16.msra.mxu0 %v1283
    %1915 = vmatprep.subr.bf16.mxu0 %v1288
    %1916 = vmatpush1.bf16.msra.mxu0 %v1287
    %1917 = vmatprep.subr.bf16.mxu0 %v1292
    %1918 = vmatpush1.bf16.msra.mxu0 %v1291
    %1919 = vmatprep.subr.bf16.mxu0 %v1296
    %1920 = vmatpush1.bf16.msra.mxu0 %v1295
    %1921 = vmatprep.subr.bf16.mxu0 %v1300
    %1922 = vmatpush1.bf16.msra.mxu0 %v1299
    %1923 = vmatprep.subr.bf16.mxu0 %v1304
    %1924 = vmatpush1.bf16.msra.mxu0 %v1303
    %1925 = vmatprep.subr.bf16.mxu0 %v1308
    %1926 = vmatpush1.bf16.msra.mxu0 %v1307
    %1927 = vmatprep.subr.bf16.mxu0 %v1312
    %1928 = vmatpush1.bf16.msra.mxu0 %v1311
    %1929 = vmatprep.subr.bf16.mxu0 %v1316
    %1930 = vmatpush1.bf16.msra.mxu0 %v1315
    %1931 = vmatprep.subr.bf16.mxu0 %v1320
    %1932 = vmatpush1.bf16.msra.mxu0 %v1319
    %1933 = vmatprep.subr.bf16.mxu0 %v1324
    %1934 = vmatpush1.bf16.msra.mxu0 %v1323
    %1935 = vmatprep.mubr.bf16.mxu0 %v84
    %1936 = vmatmul.mubr.bf16.gmra.mrb[0].mxu0 %v83
    %v1937 = vpop.f32.mrb[0].mxu0
    %v1938 = vadd.f32 %v1895, %v1937
    %v1939 = vpop.f32.mrb[0].mxu0
    %v1940 = vadd.f32 %v1897, %v1939
    %v1941 = vpop.f32.mrb[0].mxu0
    %v1942 = vadd.f32 %v1899, %v1941
    %v1943 = vpop.f32.mrb[0].mxu0
    %v1944 = vadd.f32 %v1901, %v1943
    %1945 = vdwg.mxu0
    %1946 = vmatprep.subr.bf16.mxu0 %v1328
    %1947 = vmatpush1.bf16.msra.mxu0 %v1327
    %1948 = vmatprep.subr.bf16.mxu0 %v1332
    %1949 = vmatpush1.bf16.msra.mxu0 %v1331
    %1950 = vmatprep.subr.bf16.mxu0 %v1336
    %1951 = vmatpush1.bf16.msra.mxu0 %v1335
    %1952 = vmatprep.subr.bf16.mxu0 %v1340
    %1953 = vmatpush1.bf16.msra.mxu0 %v1339
    %1954 = vmatprep.subr.bf16.mxu0 %v1344
    %1955 = vmatpush1.bf16.msra.mxu0 %v1343
    %1956 = vmatprep.subr.bf16.mxu0 %v1348
    %1957 = vmatpush1.bf16.msra.mxu0 %v1347
    %1958 = vmatprep.subr.bf16.mxu0 %v1352
    %1959 = vmatpush1.bf16.msra.mxu0 %v1351
    %1960 = vmatprep.subr.bf16.mxu0 %v1356
    %1961 = vmatpush1.bf16.msra.mxu0 %v1355
    %1962 = vmatprep.subr.bf16.mxu0 %v1360
    %1963 = vmatpush1.bf16.msra.mxu0 %v1359
    %1964 = vmatprep.subr.bf16.mxu0 %v1364
    %1965 = vmatpush1.bf16.msra.mxu0 %v1363
    %1966 = vmatprep.subr.bf16.mxu0 %v1368
    %1967 = vmatpush1.bf16.msra.mxu0 %v1367
    %1968 = vmatprep.subr.bf16.mxu0 %v1372
    %1969 = vmatpush1.bf16.msra.mxu0 %v1371
    %1970 = vmatprep.subr.bf16.mxu0 %v1376
    %1971 = vmatpush1.bf16.msra.mxu0 %v1375
    %1972 = vmatprep.subr.bf16.mxu0 %v1380
    %1973 = vmatpush1.bf16.msra.mxu0 %v1379
    %1974 = vmatprep.subr.bf16.mxu0 %v1384
    %1975 = vmatpush1.bf16.msra.mxu0 %v1383
    %1976 = vmatprep.subr.bf16.mxu0 %v1388
    %1977 = vmatpush1.bf16.msra.mxu0 %v1387
    %1978 = vmatprep.mubr.bf16.mxu0 %v86
    %1979 = vmatmul.mubr.bf16.gmra.mrb[0].mxu0 %v85
    %v1980 = vpop.f32.mrb[0].mxu0
    %v1981 = vadd.f32 %v1938, %v1980
    %v1982 = vpop.f32.mrb[0].mxu0
    %v1983 = vadd.f32 %v1940, %v1982
    %v1984 = vpop.f32.mrb[0].mxu0
    %v1985 = vadd.f32 %v1942, %v1984
    %v1986 = vpop.f32.mrb[0].mxu0
    %v1987 = vadd.f32 %v1944, %v1986
    %1988 = vdwg.mxu0
    %v1989 = vmax.f32 %v1809, 0.0
    %v1990 = vmax.f32 %v1811, 0.0
    %v1991 = vmax.f32 %v1981, 0.0
    %v1992 = vmax.f32 %v1983, 0.0
    %v1993 = vmax.f32 %v1813, 0.0
    %v1994 = vmax.f32 %v1815, 0.0
    %v1995 = vmax.f32 %v1985, 0.0
    %v1996 = vmax.f32 %v1987, 0.0
    %v1997 = vpack.c.bf16 %v1993, %v1989
    %v1998 = vpack.c.bf16 %v1994, %v1990
    %v1999 = vpack.c.bf16 %v1995, %v1991
    %v2000 = vpack.c.bf16 %v1996, %v1992
    %v2001 = vld [vmem:[#allocation7] sm:$0xf]
    %v2002 = vld [vmem:[#allocation7 + $0x4] sm:$0xf]
    %v2003 = vld [vmem:[#allocation7 + $0x8] sm:$0xf]
    %v2004 = vld [vmem:[#allocation7 + $0xc] sm:$0xf]
    %v2005 = vld [vmem:[#allocation7 + $0x10] sm:$0xf]
    %v2006 = vld [vmem:[#allocation7 + $0x14] sm:$0xf]
    %v2007 = vld [vmem:[#allocation7 + $0x18] sm:$0xf]
    %v2008 = vld [vmem:[#allocation7 + $0x1c] sm:$0xf]
    %v2009 = vld [vmem:[#allocation7 + $0x20] sm:$0xf]
    %v2010 = vld [vmem:[#allocation7 + $0x24] sm:$0xf]
    %v2011 = vld [vmem:[#allocation7 + $0x28] sm:$0xf]
    %v2012 = vld [vmem:[#allocation7 + $0x2c] sm:$0xf]
    %v2013 = vld [vmem:[#allocation7 + $0x30] sm:$0xf]
    %v2014 = vld [vmem:[#allocation7 + $0x34] sm:$0xf]
    %v2015 = vld [vmem:[#allocation7 + $0x38] sm:$0xf]
    %v2016 = vld [vmem:[#allocation7 + $0x3c] sm:$0xf]
    %v2017 = vld [vmem:[#allocation7 + $0x40] sm:$0xf]
    %v2018 = vld [vmem:[#allocation7 + $0x44] sm:$0xf]
    %v2019 = vld [vmem:[#allocation7 + $0x48] sm:$0xf]
    %v2020 = vld [vmem:[#allocation7 + $0x4c] sm:$0xf]
    %v2021 = vld [vmem:[#allocation7 + $0x50] sm:$0xf]
    %v2022 = vld [vmem:[#allocation7 + $0x54] sm:$0xf]
    %v2023 = vld [vmem:[#allocation7 + $0x58] sm:$0xf]
    %v2024 = vld [vmem:[#allocation7 + $0x5c] sm:$0xf]
    %v2025 = vld [vmem:[#allocation7 + $0x60] sm:$0xf]
    %v2026 = vld [vmem:[#allocation7 + $0x64] sm:$0xf]
    %v2027 = vld [vmem:[#allocation7 + $0x68] sm:$0xf]
    %v2028 = vld [vmem:[#allocation7 + $0x6c] sm:$0xf]
    %v2029 = vld [vmem:[#allocation7 + $0x70] sm:$0xf]
    %v2030 = vld [vmem:[#allocation7 + $0x74] sm:$0xf]
    %v2031 = vld [vmem:[#allocation7 + $0x78] sm:$0xf]
    %v2032 = vld [vmem:[#allocation7 + $0x7c] sm:$0xf]
    %v2033 = vld [vmem:[#allocation7 + $0x80] sm:$0xf]
    %v2034 = vld [vmem:[#allocation7 + $0x84] sm:$0xf]
    %v2035 = vld [vmem:[#allocation7 + $0x88] sm:$0xf]
    %v2036 = vld [vmem:[#allocation7 + $0x8c] sm:$0xf]
    %v2037 = vld [vmem:[#allocation7 + $0x90] sm:$0xf]
    %v2038 = vld [vmem:[#allocation7 + $0x94] sm:$0xf]
    %v2039 = vld [vmem:[#allocation7 + $0x98] sm:$0xf]
    %v2040 = vld [vmem:[#allocation7 + $0x9c] sm:$0xf]
    %v2041 = vld [vmem:[#allocation7 + $0xa0] sm:$0xf]
    %v2042 = vld [vmem:[#allocation7 + $0xa4] sm:$0xf]
    %v2043 = vld [vmem:[#allocation7 + $0xa8] sm:$0xf]
    %v2044 = vld [vmem:[#allocation7 + $0xac] sm:$0xf]
    %v2045 = vld [vmem:[#allocation7 + $0xb0] sm:$0xf]
    %v2046 = vld [vmem:[#allocation7 + $0xb4] sm:$0xf]
    %v2047 = vld [vmem:[#allocation7 + $0xb8] sm:$0xf]
    %v2048 = vld [vmem:[#allocation7 + $0xbc] sm:$0xf]
    %v2049 = vld [vmem:[#allocation7 + $0xc0] sm:$0xf]
    %v2050 = vld [vmem:[#allocation7 + $0xc4] sm:$0xf]
    %v2051 = vld [vmem:[#allocation7 + $0xc8] sm:$0xf]
    %v2052 = vld [vmem:[#allocation7 + $0xcc] sm:$0xf]
    %v2053 = vld [vmem:[#allocation7 + $0xd0] sm:$0xf]
    %v2054 = vld [vmem:[#allocation7 + $0xd4] sm:$0xf]
    %v2055 = vld [vmem:[#allocation7 + $0xd8] sm:$0xf]
    %v2056 = vld [vmem:[#allocation7 + $0xdc] sm:$0xf]
    %v2057 = vld [vmem:[#allocation7 + $0xe0] sm:$0xf]
    %v2058 = vld [vmem:[#allocation7 + $0xe4] sm:$0xf]
    %v2059 = vld [vmem:[#allocation7 + $0xe8] sm:$0xf]
    %v2060 = vld [vmem:[#allocation7 + $0xec] sm:$0xf]
    %v2061 = vld [vmem:[#allocation7 + $0xf0] sm:$0xf]
    %v2062 = vld [vmem:[#allocation7 + $0xf4] sm:$0xf]
    %v2063 = vld [vmem:[#allocation7 + $0xf8] sm:$0xf]
    %v2064 = vld [vmem:[#allocation7 + $0xfc] sm:$0xf]
    %v2065 = vld [vmem:[%s4] sm:$0x1]
    %v2067 = vlaneseq
    %v2068 = vshrl.u32 %v2067, 7
    %v2069 = vsub.s32 0, %v2068
    %v2070 = vrot.slane %v2065, %v2069
    %v2136 = vunpack.c.l.b16 %v2001
    %v2137 = vunpack.c.l.b16 %v2002
    %v2138 = vunpack.c.l.b16 %v2003
    %v2139 = vunpack.c.l.b16 %v2004
    %v2140 = vunpack.c.l.b16 %v2005
    %v2141 = vunpack.c.l.b16 %v2006
    %v2142 = vunpack.c.l.b16 %v2007
    %v2143 = vunpack.c.l.b16 %v2008
    %v2144 = vunpack.c.l.b16 %v2009
    %v2145 = vunpack.c.l.b16 %v2010
    %v2146 = vunpack.c.l.b16 %v2011
    %v2147 = vunpack.c.l.b16 %v2012
    %v2148 = vunpack.c.l.b16 %v2013
    %v2149 = vunpack.c.l.b16 %v2014
    %v2150 = vunpack.c.l.b16 %v2015
    %v2151 = vunpack.c.l.b16 %v2016
    %v2152 = vunpack.c.l.b16 %v2017
    %v2153 = vunpack.c.l.b16 %v2018
    %v2154 = vunpack.c.l.b16 %v2019
    %v2155 = vunpack.c.l.b16 %v2020
    %v2156 = vunpack.c.l.b16 %v2021
    %v2157 = vunpack.c.l.b16 %v2022
    %v2158 = vunpack.c.l.b16 %v2023
    %v2159 = vunpack.c.l.b16 %v2024
    %v2160 = vunpack.c.l.b16 %v2025
    %v2161 = vunpack.c.l.b16 %v2026
    %v2162 = vunpack.c.l.b16 %v2027
    %v2163 = vunpack.c.l.b16 %v2028
    %v2164 = vunpack.c.l.b16 %v2029
    %v2165 = vunpack.c.l.b16 %v2030
    %v2166 = vunpack.c.l.b16 %v2031
    %v2167 = vunpack.c.l.b16 %v2032
    %v2168 = vunpack.c.l.b16 %v2033
    %v2169 = vunpack.c.l.b16 %v2034
    %v2170 = vunpack.c.l.b16 %v2035
    %v2171 = vunpack.c.l.b16 %v2036
    %v2172 = vunpack.c.l.b16 %v2037
    %v2173 = vunpack.c.l.b16 %v2038
    %v2174 = vunpack.c.l.b16 %v2039
    %v2175 = vunpack.c.l.b16 %v2040
    %v2176 = vunpack.c.l.b16 %v2041
    %v2177 = vunpack.c.l.b16 %v2042
    %v2178 = vunpack.c.l.b16 %v2043
    %v2179 = vunpack.c.l.b16 %v2044
    %v2180 = vunpack.c.l.b16 %v2045
    %v2181 = vunpack.c.l.b16 %v2046
    %v2182 = vunpack.c.l.b16 %v2047
    %v2183 = vunpack.c.l.b16 %v2048
    %v2184 = vunpack.c.l.b16 %v2049
    %v2185 = vunpack.c.l.b16 %v2050
    %v2186 = vunpack.c.l.b16 %v2051
    %v2187 = vunpack.c.l.b16 %v2052
    %v2188 = vunpack.c.l.b16 %v2053
    %v2189 = vunpack.c.l.b16 %v2054
    %v2190 = vunpack.c.l.b16 %v2055
    %v2191 = vunpack.c.l.b16 %v2056
    %v2192 = vunpack.c.l.b16 %v2057
    %v2193 = vunpack.c.l.b16 %v2058
    %v2194 = vunpack.c.l.b16 %v2059
    %v2195 = vunpack.c.l.b16 %v2060
    %v2196 = vunpack.c.l.b16 %v2061
    %v2197 = vunpack.c.l.b16 %v2062
    %v2198 = vunpack.c.l.b16 %v2063
    %v2199 = vunpack.c.l.b16 %v2064
    %v2200 = vpack.c.b16 %v2137, %v2136
    %v2201 = vpack.c.b16 %v2139, %v2138
    %v2202 = vpack.c.b16 %v2141, %v2140
    %v2203 = vpack.c.b16 %v2143, %v2142
    %v2204 = vpack.c.b16 %v2145, %v2144
    %v2205 = vpack.c.b16 %v2147, %v2146
    %v2206 = vpack.c.b16 %v2149, %v2148
    %v2207 = vpack.c.b16 %v2151, %v2150
    %v2208 = vpack.c.b16 %v2153, %v2152
    %v2209 = vpack.c.b16 %v2155, %v2154
    %v2210 = vpack.c.b16 %v2157, %v2156
    %v2211 = vpack.c.b16 %v2159, %v2158
    %v2212 = vpack.c.b16 %v2161, %v2160
    %v2213 = vpack.c.b16 %v2163, %v2162
    %v2214 = vpack.c.b16 %v2165, %v2164
    %v2215 = vpack.c.b16 %v2167, %v2166
    %v2216 = vpack.c.b16 %v2169, %v2168
    %v2217 = vpack.c.b16 %v2171, %v2170
    %v2218 = vpack.c.b16 %v2173, %v2172
    %v2219 = vpack.c.b16 %v2175, %v2174
    %v2220 = vpack.c.b16 %v2177, %v2176
    %v2221 = vpack.c.b16 %v2179, %v2178
    %v2222 = vpack.c.b16 %v2181, %v2180
    %v2223 = vpack.c.b16 %v2183, %v2182
    %v2224 = vpack.c.b16 %v2185, %v2184
    %v2225 = vpack.c.b16 %v2187, %v2186
    %v2226 = vpack.c.b16 %v2189, %v2188
    %v2227 = vpack.c.b16 %v2191, %v2190
    %v2228 = vpack.c.b16 %v2193, %v2192
    %v2229 = vpack.c.b16 %v2195, %v2194
    %v2230 = vpack.c.b16 %v2197, %v2196
    %v2231 = vpack.c.b16 %v2199, %v2198
    %2264 = vmatprep.subr.bf16.mxu0 0
    %2265 = vmatpush1.bf16.msra.mxu0 %v2200
    %2266 = vmatprep.subr.bf16.mxu0 0
    %2267 = vmatpush1.bf16.msra.mxu0 %v2201
    %2268 = vmatprep.subr.bf16.mxu0 0
    %2269 = vmatpush1.bf16.msra.mxu0 %v2202
    %2270 = vmatprep.subr.bf16.mxu0 0
    %2271 = vmatpush1.bf16.msra.mxu0 %v2203
    %2272 = vmatprep.subr.bf16.mxu0 0
    %2273 = vmatpush1.bf16.msra.mxu0 %v2204
    %2274 = vmatprep.subr.bf16.mxu0 0
    %2275 = vmatpush1.bf16.msra.mxu0 %v2205
    %2276 = vmatprep.subr.bf16.mxu0 0
    %2277 = vmatpush1.bf16.msra.mxu0 %v2206
    %2278 = vmatprep.subr.bf16.mxu0 0
    %2279 = vmatpush1.bf16.msra.mxu0 %v2207
    %2280 = vmatprep.subr.bf16.mxu0 0
    %2281 = vmatpush1.bf16.msra.mxu0 %v2208
    %2282 = vmatprep.subr.bf16.mxu0 0
    %2283 = vmatpush1.bf16.msra.mxu0 %v2209
    %2284 = vmatprep.subr.bf16.mxu0 0
    %2285 = vmatpush1.bf16.msra.mxu0 %v2210
    %2286 = vmatprep.subr.bf16.mxu0 0
    %2287 = vmatpush1.bf16.msra.mxu0 %v2211
    %2288 = vmatprep.subr.bf16.mxu0 0
    %2289 = vmatpush1.bf16.msra.mxu0 %v2212
    %2290 = vmatprep.subr.bf16.mxu0 0
    %2291 = vmatpush1.bf16.msra.mxu0 %v2213
    %2292 = vmatprep.subr.bf16.mxu0 0
    %2293 = vmatpush1.bf16.msra.mxu0 %v2214
    %2294 = vmatprep.subr.bf16.mxu0 0
    %2295 = vmatpush1.bf16.msra.mxu0 %v2215
    %2296 = vmatprep.mubr.bf16.mxu0 %v1998
    %2297 = vmatmul.mubr.bf16.gmra.mrb[0].mxu0 %v1997
    %v2298 = vpop.f32.mrb[0].mxu0
    %v2299 = vadd.f32 %v2070, %v2298
    %v2300 = vpop.f32.mrb[0].mxu0
    %v2301 = vpop.f32.mrb[0].mxu0
    %v2302 = vadd.f32 %v2070, %v2301
    %v2303 = vpop.f32.mrb[0].mxu0
    %2304 = vdwg.mxu0
    %2305 = vmatprep.subr.bf16.mxu0 0
    %2306 = vmatpush1.bf16.msra.mxu0 %v2216
    %2307 = vmatprep.subr.bf16.mxu0 0
    %2308 = vmatpush1.bf16.msra.mxu0 %v2217
    %2309 = vmatprep.subr.bf16.mxu0 0
    %2310 = vmatpush1.bf16.msra.mxu0 %v2218
    %2311 = vmatprep.subr.bf16.mxu0 0
    %2312 = vmatpush1.bf16.msra.mxu0 %v2219
    %2313 = vmatprep.subr.bf16.mxu0 0
    %2314 = vmatpush1.bf16.msra.mxu0 %v2220
    %2315 = vmatprep.subr.bf16.mxu0 0
    %2316 = vmatpush1.bf16.msra.mxu0 %v2221
    %2317 = vmatprep.subr.bf16.mxu0 0
    %2318 = vmatpush1.bf16.msra.mxu0 %v2222
    %2319 = vmatprep.subr.bf16.mxu0 0
    %2320 = vmatpush1.bf16.msra.mxu0 %v2223
    %2321 = vmatprep.subr.bf16.mxu0 0
    %2322 = vmatpush1.bf16.msra.mxu0 %v2224
    %2323 = vmatprep.subr.bf16.mxu0 0
    %2324 = vmatpush1.bf16.msra.mxu0 %v2225
    %2325 = vmatprep.subr.bf16.mxu0 0
    %2326 = vmatpush1.bf16.msra.mxu0 %v2226
    %2327 = vmatprep.subr.bf16.mxu0 0
    %2328 = vmatpush1.bf16.msra.mxu0 %v2227
    %2329 = vmatprep.subr.bf16.mxu0 0
    %2330 = vmatpush1.bf16.msra.mxu0 %v2228
    %2331 = vmatprep.subr.bf16.mxu0 0
    %2332 = vmatpush1.bf16.msra.mxu0 %v2229
    %2333 = vmatprep.subr.bf16.mxu0 0
    %2334 = vmatpush1.bf16.msra.mxu0 %v2230
    %2335 = vmatprep.subr.bf16.mxu0 0
    %2336 = vmatpush1.bf16.msra.mxu0 %v2231
    %2337 = vmatprep.mubr.bf16.mxu0 %v2000
    %2338 = vmatmul.mubr.bf16.gmra.mrb[0].mxu0 %v1999
    %v2339 = vpop.f32.mrb[0].mxu0
    %v2340 = vadd.f32 %v2299, %v2339
    %v2341 = vpop.f32.mrb[0].mxu0
    %v2342 = vpop.f32.mrb[0].mxu0
    %v2343 = vadd.f32 %v2302, %v2342
    %v2344 = vpop.f32.mrb[0].mxu0
    %2345 = vdwg.mxu0
    %v2346 = vxor.u32 %v2340, 2147483648
    %v2347 = vxor.u32 %v2343, 2147483648
    %v2348 = vmul.f32 %v2346, 1.442695
    %v2349 = vpow.pop %v2348
    %v2350 = vmul.f32 %v2347, 1.442695
    %v2351 = vpow.pop %v2350
    %v2352 = vadd.f32 %v2349, 1.0
    %v2353 = vadd.f32 %v2351, 1.0
    %v2354 = vrcp.pop %v2352
    %v2355 = vmul.f32 1.0, %v2354
    %v2356 = vrcp.pop %v2353
    %v2357 = vmul.f32 1.0, %v2356
    %v2358 = vpack.c.bf16 %v2357, %v2355
    %v2360 = vunpack.c.l.b16 %v2358
    %v2361 = vunpack.c.h.b16 %v2358
    %v2362 = vpack.c.b16 %v2360, %v2360
    %v2363 = vpack.c.b16 %v2361, %v2361
    %2366 = vst [vmem:[#allocation8] sm:$0xf] %v2362
    %2367 = vst [vmem:[#allocation8 + $0x4] sm:$0xf] %v2363
    // Predicated region
    $region34: #{tpu_custom_call.1} parent=1 // pred_check
      _
    $region35: #{tpu_custom_call.1} parent=1 // pred_check_branch
      %2369 = sbr.rel (0) target = $region37
    $region36: #{tpu_custom_call.1} parent=1 // pred_region
      %s2371 = ssub.s32 128, 128
      %2372 = vsyncadd [#allocation4], %s2371
      %s2373 = sshll.u32 [#allocation8], 4
      %s2374 = int_to_ptr.vmem [resolvable:$true] %s2373
      %2379 = dma.vmem_to_hbm [thread:$0]  %s2374, 128, %s5, [#allocation4], 64, 64, 4
    $region37: #{tpu_custom_call.1} parent=1 // pred_fallthru
      _
    // Predicated region
    $region38: #{tpu_custom_call.1} parent=1 // pred_check
      _
    $region39: #{tpu_custom_call.1} parent=1 // pred_check_branch
      %2381 = sbr.rel (0) target = $region41
    $region40: #{tpu_custom_call.1} parent=1 // pred_region
      %2382 = dma.done [#allocation4], 128
    $region41: #{tpu_custom_call.1} parent=1 // pred_fallthru
      _
    %2383 = vsyncpa [#allocation3], 1
    %2384 = vsyncpa [#allocation6], 1
    %2385 = vsyncpa [#allocation4], 1

</llo_original>
